<compile_context>
chip_gen: v6e
topology: v6e:2x2x1
jax: 0.10.0
libtpu: 0.0.40
codegen_flags: <defaults>
</compile_context>

<pallas_src>
import jax
import jax.numpy as jnp
from jax import lax
from jax.experimental import pallas as pl
from jax.experimental.pallas import tpu as pltpu


def _lstm_loss_kernel(x2d_ref, cond_ref, wchar_ref, wcond_ref, b_ref,
                      whh_ref, wout_ref, bout_ref, gold_ref, mask_ref,
                      out_ref, xproj_ref, hs_ref):
    TB = x2d_ref.shape[0]
    B = cond_ref.shape[0]
    T = TB // B
    H = whh_ref.shape[0]
    V = wout_ref.shape[1]

    # ---- Phase 1: batched input projection (one big MXU matmul over all timesteps).
    xproj_ref[...] = jnp.dot(x2d_ref[...], wchar_ref[...],
                             preferred_element_type=jnp.float32)       # (T*B, 4H)

    # Time-invariant conditioner contribution + bias, computed once (hoisted).
    base = (jnp.dot(cond_ref[...], wcond_ref[...],
                    preferred_element_type=jnp.float32)
            + b_ref[...])                                              # (B, 4H)
    whh = whh_ref[...]                                                 # hoisted load

    # ---- Phase 2: serial recurrence — only h@W_hh + gate nonlinearities per step.
    h0 = jnp.zeros((B, H), jnp.float32)
    c0 = jnp.zeros((B, H), jnp.float32)

    def step(t, carry):
        h, c = carry
        row = pl.multiple_of(t * B, B)
        gates = (xproj_ref[pl.ds(row, B), :] + base
                 + jnp.dot(h, whh, preferred_element_type=jnp.float32))  # (B, 4H)
        # NOTE: with H=32 these are sub-vreg lane slices; acceptable at demo sizes.
        i_g = jax.nn.sigmoid(gates[:, 0:H])
        f_g = jax.nn.sigmoid(gates[:, H:2 * H])
        g_g = jnp.tanh(gates[:, 2 * H:3 * H])
        o_g = jax.nn.sigmoid(gates[:, 3 * H:4 * H])
        c_new = f_g * c + i_g * g_g
        h_new = o_g * jnp.tanh(c_new)
        hs_ref[pl.ds(row, B), :] = h_new
        return (h_new, c_new)

    lax.fori_loop(0, T, step, (h0, c0), unroll=True)

    # ---- Phase 3: deferred output head — one batched matmul + log-softmax + NLL.
    logits = (jnp.dot(hs_ref[...], wout_ref[...],
                      preferred_element_type=jnp.float32)
              + bout_ref[...])                                         # (T*B, V)
    m = jnp.max(logits, axis=-1, keepdims=True)
    lse = m + jnp.log(jnp.sum(jnp.exp(logits - m), axis=-1, keepdims=True))
    onehot = lax.broadcasted_iota(jnp.int32, (TB, V), 1) == gold_ref[...]
    picked = jnp.sum(jnp.where(onehot, logits, 0.0), axis=-1, keepdims=True)
    nll = (lse - picked) * mask_ref[...]                               # (T*B, 1)

    # Sum over time (rows are time-major blocks of B); single final store.
    loss = nll[0:B, :]
    for t in range(1, T):
        loss = loss + nll[t * B:(t + 1) * B, :]
    out_ref[...] = loss


def conditioned_lstm_loss(full_conditioner, gold_in, gold_out, gold_lengths, params):
    """Returns per-example loss, shape (B,), matching the torch forward()."""
    emb = params["emb"]
    w_ih, w_hh = params["w_ih"], params["w_hh"]
    b_ih, b_hh = params["b_ih"], params["b_hh"]
    w_out, b_out = params["w_out"], params["b_out"]

    B, T = gold_in.shape
    C = full_conditioner.shape[1]
    tok = emb.shape[1]
    H = w_hh.shape[1]

    # Glue (layout plumbing only): embedding lookup, time-major flatten.
    # combi = [conditioner | char_emb]; the conditioner is NOT broadcast over T —
    # it is passed once and folded into the per-example gate bias inside the kernel.
    char2d = emb[gold_in.T].reshape(T * B, tok).astype(jnp.float32)    # (T*B, tok)
    cond = full_conditioner.astype(jnp.float32)                        # (B, C)

    wcond = w_ih[:, :C].T.astype(jnp.float32)                          # (C, 4H)
    wchar = w_ih[:, C:].T.astype(jnp.float32)                          # (tok, 4H)
    bias = (b_ih + b_hh).reshape(1, -1).astype(jnp.float32)            # (1, 4H)
    whh_t = w_hh.T.astype(jnp.float32)                                 # (H, 4H)
    wout_t = w_out.T.astype(jnp.float32)                               # (H, V)
    bout = b_out.reshape(1, -1).astype(jnp.float32)                    # (1, V)

    gold2d = gold_out.T.reshape(T * B, 1).astype(jnp.int32)            # (T*B, 1)
    mask2d = (jnp.arange(T, dtype=jnp.int32)[:, None]
              < gold_lengths[None, :].astype(jnp.int32))               # (T, B)
    mask2d = mask2d.astype(jnp.float32).reshape(T * B, 1)

    vmem = pl.BlockSpec(memory_space=pltpu.MemorySpace.VMEM)
    out = pl.pallas_call(
        _lstm_loss_kernel,
        out_shape=jax.ShapeDtypeStruct((B, 1), jnp.float32),
        in_specs=[vmem] * 10,
        out_specs=vmem,
        scratch_shapes=[pltpu.VMEM((T * B, 4 * H), jnp.float32),   # input projection
                        pltpu.VMEM((T * B, H), jnp.float32)],      # hidden states
    )(char2d, cond, wchar, wcond, bias, whh_t, wout_t, bout, gold2d, mask2d)
    return out[:, 0]


def reference_loss(full_conditioner, gold_in, gold_out, gold_lengths, params):
    """Pure-JAX reference reproducing the PyTorch forward (feed_samples=False)."""
    emb = params["emb"]
    w_ih, w_hh = params["w_ih"], params["w_hh"]
    b_ih, b_hh = params["b_ih"], params["b_hh"]
    w_out, b_out = params["w_out"], params["b_out"]
    B, T = gold_in.shape
    H = w_hh.shape[1]
    C = full_conditioner.shape[1]

    all_char = emb[gold_in.T]
    cond = jnp.broadcast_to(full_conditioner[None], (T, B, C))
    combi = jnp.concatenate([cond, all_char], axis=-1).astype(jnp.float32)

    def cell(carry, x_t):
        h, c = carry
        gates = x_t @ w_ih.T + b_ih + h @ w_hh.T + b_hh
        i_g, f_g, g_g, o_g = jnp.split(gates, 4, axis=-1)
        c = jax.nn.sigmoid(f_g) * c + jax.nn.sigmoid(i_g) * jnp.tanh(g_g)
        h = jax.nn.sigmoid(o_g) * jnp.tanh(c)
        return (h, c), h

    h0 = jnp.zeros((B, H), jnp.float32)
    _, outs = lax.scan(cell, (h0, h0), combi)                          # (T, B, H)
    preds = outs @ w_out.T + b_out                                     # (T, B, V)
    logp = jax.nn.log_softmax(preds, axis=-1).transpose(1, 0, 2)       # (B, T, V)
    gathered = jnp.take_along_axis(logp, gold_out[..., None], axis=-1)[..., 0]
    mask = (jnp.arange(T)[None, :] < gold_lengths[:, None]).astype(gathered.dtype)
    return -(gathered * mask).sum(axis=1)


if __name__ == "__main__":
    key = jax.random.PRNGKey(0)

    # Sizes implied by the module: vocab V, token_dim, conditioner_size, hidden H.
    B, T = 8, 8
    V, token_dim, cond_size, H = 128, 16, 16, 32
    D = cond_size + token_dim                                          # input_size

    ks = jax.random.split(key, 12)
    k_ih = 1.0 / jnp.sqrt(H)
    params = {
        "emb":   jax.random.normal(ks[0], (V, token_dim), jnp.float32),
        "w_ih":  jax.random.uniform(ks[1], (4 * H, D), jnp.float32, -k_ih, k_ih),
        "w_hh":  jax.random.uniform(ks[2], (4 * H, H), jnp.float32, -k_ih, k_ih),
        "b_ih":  jax.random.uniform(ks[3], (4 * H,), jnp.float32, -k_ih, k_ih),
        "b_hh":  jax.random.uniform(ks[4], (4 * H,), jnp.float32, -k_ih, k_ih),
        "w_out": jax.random.uniform(ks[5], (V, H), jnp.float32, -k_ih, k_ih),
        "b_out": jax.random.uniform(ks[6], (V,), jnp.float32, -k_ih, k_ih),
    }

    full_conditioner = jax.random.normal(ks[7], (B, cond_size), jnp.float32)
    bos, eos = 1, 2
    gold_in = jax.random.randint(ks[8], (B, T), 3, V).astype(jnp.int32)
    gold_in = gold_in.at[:, 0].set(bos)                                # first col = <bos>
    gold_out = jax.random.randint(ks[9], (B, T), 3, V).astype(jnp.int32)
    gold_out = gold_out.at[:, -1].set(eos)                             # last col = <eos>
    gold_lengths = jax.random.randint(ks[10], (B,), 1, T + 1).astype(jnp.int32)

    loss = conditioned_lstm_loss(full_conditioner, gold_in, gold_out,
                                 gold_lengths, params)
    loss = jax.block_until_ready(loss)

    ref = reference_loss(full_conditioner, gold_in, gold_out, gold_lengths, params)
    assert loss.shape == (B,)
    assert jnp.allclose(loss, ref, rtol=1e-4, atol=1e-3), (loss, ref)

    print("KERNEL_OK")
</pallas_src>

<mosaic_0001>
module attributes {stable_mosaic.version = 11 : i64} {
  func.func @_lstm_loss_kernel(%arg0: memref<64x16xf32, #tpu.memory_space<vmem>>, %arg1: memref<8x16xf32, #tpu.memory_space<vmem>>, %arg2: memref<16x128xf32, #tpu.memory_space<vmem>>, %arg3: memref<16x128xf32, #tpu.memory_space<vmem>>, %arg4: memref<1x128xf32, #tpu.memory_space<vmem>>, %arg5: memref<32x128xf32, #tpu.memory_space<vmem>>, %arg6: memref<32x128xf32, #tpu.memory_space<vmem>>, %arg7: memref<1x128xf32, #tpu.memory_space<vmem>>, %arg8: memref<64x1xi32, #tpu.memory_space<vmem>>, %arg9: memref<64x1xf32, #tpu.memory_space<vmem>>, %arg10: memref<8x1xf32, #tpu.memory_space<vmem>>, %arg11: memref<64x128xf32, #tpu.memory_space<vmem>>, %arg12: memref<64x32xf32, #tpu.memory_space<vmem>>) attributes {dimension_semantics = [], scalar_prefetch = 0 : i64, scratch_operands = 2 : i64, tpu.core_type = #tpu.core_type<tc>} {
    %c0 = arith.constant 0 : index
    %c0_0 = arith.constant 0 : index
    %0 = vector.load %arg0[%c0, %c0_0] : memref<64x16xf32, #tpu.memory_space<vmem>>, vector<64x16xf32>
    %c0_1 = arith.constant 0 : index
    %c0_2 = arith.constant 0 : index
    %1 = vector.load %arg2[%c0_1, %c0_2] : memref<16x128xf32, #tpu.memory_space<vmem>>, vector<16x128xf32>
    %cst = arith.constant dense<0.000000e+00> : vector<64x128xf32>
    %2 = tpu.matmul %0, %1, %cst {dimension_numbers = #tpu.dot_dimension_numbers<[1], [0], [0], [1], [0, 0, 1, 1], [], []>} : vector<64x16xf32>, vector<16x128xf32>, vector<64x128xf32> -> vector<64x128xf32>
    %c0_3 = arith.constant 0 : index
    %c0_4 = arith.constant 0 : index
    %3 = vector.load %arg11[%c0_3, %c0_4] : memref<64x128xf32, #tpu.memory_space<vmem>>, vector<64x128xf32>
    tpu.vector_store %arg11[%c0_3, %c0_4], %2 {strides = array<i32>} : memref<64x128xf32, #tpu.memory_space<vmem>>, vector<64x128xf32>,
    %c0_5 = arith.constant 0 : index
    %c0_6 = arith.constant 0 : index
    %4 = vector.load %arg1[%c0_5, %c0_6] : memref<8x16xf32, #tpu.memory_space<vmem>>, vector<8x16xf32>
    %c0_7 = arith.constant 0 : index
    %c0_8 = arith.constant 0 : index
    %5 = vector.load %arg3[%c0_7, %c0_8] : memref<16x128xf32, #tpu.memory_space<vmem>>, vector<16x128xf32>
    %cst_9 = arith.constant dense<0.000000e+00> : vector<8x128xf32>
    %6 = tpu.matmul %4, %5, %cst_9 {dimension_numbers = #tpu.dot_dimension_numbers<[1], [0], [0], [1], [0, 0, 1, 1], [], []>} : vector<8x16xf32>, vector<16x128xf32>, vector<8x128xf32> -> vector<8x128xf32>
    %c0_10 = arith.constant 0 : index
    %c0_11 = arith.constant 0 : index
    %7 = vector.load %arg4[%c0_10, %c0_11] : memref<1x128xf32, #tpu.memory_space<vmem>>, vector<1x128xf32>
    %8 = vector.broadcast %7 : vector<1x128xf32> to vector<8x128xf32>
    %9 = arith.addf %6, %8 : vector<8x128xf32>
    %c0_12 = arith.constant 0 : index
    %c0_13 = arith.constant 0 : index
    %10 = vector.load %arg5[%c0_12, %c0_13] : memref<32x128xf32, #tpu.memory_space<vmem>>, vector<32x128xf32>
    %cst_14 = arith.constant 0.000000e+00 : f32
    %11 = vector.broadcast %cst_14 : f32 to vector<8x32xf32>
    %cst_15 = arith.constant 0.000000e+00 : f32
    %12 = vector.broadcast %cst_15 : f32 to vector<8x32xf32>
    %c0_i32 = arith.constant 0 : i32
    %c8_i32 = arith.constant 8 : i32
    %13 = arith.muli %c0_i32, %c8_i32 : i32
    %14 = tpu.assume_multiple %13, 8 : i32
    %15 = arith.index_cast %14 : i32 to index
    %c0_16 = arith.constant 0 : index
    %16 = vector.load %arg11[%15, %c0_16] : memref<64x128xf32, #tpu.memory_space<vmem>>, vector<8x128xf32>
    %17 = arith.addf %16, %9 : vector<8x128xf32>
    %cst_17 = arith.constant dense<0.000000e+00> : vector<8x128xf32>
    %18 = tpu.matmul %11, %10, %cst_17 {dimension_numbers = #tpu.dot_dimension_numbers<[1], [0], [0], [1], [0, 0, 1, 1], [], []>} : vector<8x32xf32>, vector<32x128xf32>, vector<8x128xf32> -> vector<8x128xf32>
    %19 = arith.addf %17, %18 : vector<8x128xf32>
    %20 = vector.extract_strided_slice %19 {offsets = [0, 0], sizes = [8, 32], strides = [1, 1]} : vector<8x128xf32> to vector<8x32xf32>
    %21 = arith.negf %20 : vector<8x32xf32>
    %22 = math.exp %21 : vector<8x32xf32>
    %cst_18 = arith.constant 1.000000e+00 : f32
    %23 = vector.broadcast %cst_18 : f32 to vector<8x32xf32>
    %24 = arith.addf %23, %22 : vector<8x32xf32>
    %25 = arith.divf %23, %24 : vector<8x32xf32>
    %26 = vector.extract_strided_slice %19 {offsets = [0, 32], sizes = [8, 32], strides = [1, 1]} : vector<8x128xf32> to vector<8x32xf32>
    %27 = arith.negf %26 : vector<8x32xf32>
    %28 = math.exp %27 : vector<8x32xf32>
    %cst_19 = arith.constant 1.000000e+00 : f32
    %29 = vector.broadcast %cst_19 : f32 to vector<8x32xf32>
    %30 = arith.addf %29, %28 : vector<8x32xf32>
    %31 = arith.divf %29, %30 : vector<8x32xf32>
    %32 = vector.extract_strided_slice %19 {offsets = [0, 64], sizes = [8, 32], strides = [1, 1]} : vector<8x128xf32> to vector<8x32xf32>
    %33 = math.tanh %32 : vector<8x32xf32>
    %34 = vector.extract_strided_slice %19 {offsets = [0, 96], sizes = [8, 32], strides = [1, 1]} : vector<8x128xf32> to vector<8x32xf32>
    %35 = arith.negf %34 : vector<8x32xf32>
    %36 = math.exp %35 : vector<8x32xf32>
    %cst_20 = arith.constant 1.000000e+00 : f32
    %37 = vector.broadcast %cst_20 : f32 to vector<8x32xf32>
    %38 = arith.addf %37, %36 : vector<8x32xf32>
    %39 = arith.divf %37, %38 : vector<8x32xf32>
    %40 = arith.mulf %31, %12 : vector<8x32xf32>
    %41 = arith.mulf %25, %33 : vector<8x32xf32>
    %42 = arith.addf %40, %41 : vector<8x32xf32>
    %43 = math.tanh %42 : vector<8x32xf32>
    %44 = arith.mulf %39, %43 : vector<8x32xf32>
    %45 = arith.index_cast %14 : i32 to index
    %c0_21 = arith.constant 0 : index
    %46 = vector.load %arg12[%45, %c0_21] : memref<64x32xf32, #tpu.memory_space<vmem>>, vector<8x32xf32>
    tpu.vector_store %arg12[%45, %c0_21], %44 {strides = array<i32>} : memref<64x32xf32, #tpu.memory_space<vmem>>, vector<8x32xf32>,
    %c1_i32 = arith.constant 1 : i32
    %c8_i32_22 = arith.constant 8 : i32
    %47 = arith.muli %c1_i32, %c8_i32_22 : i32
    %48 = tpu.assume_multiple %47, 8 : i32
    %49 = arith.index_cast %48 : i32 to index
    %c0_23 = arith.constant 0 : index
    %50 = vector.load %arg11[%49, %c0_23] : memref<64x128xf32, #tpu.memory_space<vmem>>, vector<8x128xf32>
    %51 = arith.addf %50, %9 : vector<8x128xf32>
    %cst_24 = arith.constant dense<0.000000e+00> : vector<8x128xf32>
    %52 = tpu.matmul %44, %10, %cst_24 {dimension_numbers = #tpu.dot_dimension_numbers<[1], [0], [0], [1], [0, 0, 1, 1], [], []>} : vector<8x32xf32>, vector<32x128xf32>, vector<8x128xf32> -> vector<8x128xf32>
    %53 = arith.addf %51, %52 : vector<8x128xf32>
    %54 = vector.extract_strided_slice %53 {offsets = [0, 0], sizes = [8, 32], strides = [1, 1]} : vector<8x128xf32> to vector<8x32xf32>
    %55 = arith.negf %54 : vector<8x32xf32>
    %56 = math.exp %55 : vector<8x32xf32>
    %cst_25 = arith.constant 1.000000e+00 : f32
    %57 = vector.broadcast %cst_25 : f32 to vector<8x32xf32>
    %58 = arith.addf %57, %56 : vector<8x32xf32>
    %59 = arith.divf %57, %58 : vector<8x32xf32>
    %60 = vector.extract_strided_slice %53 {offsets = [0, 32], sizes = [8, 32], strides = [1, 1]} : vector<8x128xf32> to vector<8x32xf32>
    %61 = arith.negf %60 : vector<8x32xf32>
    %62 = math.exp %61 : vector<8x32xf32>
    %cst_26 = arith.constant 1.000000e+00 : f32
    %63 = vector.broadcast %cst_26 : f32 to vector<8x32xf32>
    %64 = arith.addf %63, %62 : vector<8x32xf32>
    %65 = arith.divf %63, %64 : vector<8x32xf32>
    %66 = vector.extract_strided_slice %53 {offsets = [0, 64], sizes = [8, 32], strides = [1, 1]} : vector<8x128xf32> to vector<8x32xf32>
    %67 = math.tanh %66 : vector<8x32xf32>
    %68 = vector.extract_strided_slice %53 {offsets = [0, 96], sizes = [8, 32], strides = [1, 1]} : vector<8x128xf32> to vector<8x32xf32>
    %69 = arith.negf %68 : vector<8x32xf32>
    %70 = math.exp %69 : vector<8x32xf32>
    %cst_27 = arith.constant 1.000000e+00 : f32
    %71 = vector.broadcast %cst_27 : f32 to vector<8x32xf32>
    %72 = arith.addf %71, %70 : vector<8x32xf32>
    %73 = arith.divf %71, %72 : vector<8x32xf32>
    %74 = arith.mulf %65, %42 : vector<8x32xf32>
    %75 = arith.mulf %59, %67 : vector<8x32xf32>
    %76 = arith.addf %74, %75 : vector<8x32xf32>
    %77 = math.tanh %76 : vector<8x32xf32>
    %78 = arith.mulf %73, %77 : vector<8x32xf32>
    %79 = arith.index_cast %48 : i32 to index
    %c0_28 = arith.constant 0 : index
    %80 = vector.load %arg12[%79, %c0_28] : memref<64x32xf32, #tpu.memory_space<vmem>>, vector<8x32xf32>
    tpu.vector_store %arg12[%79, %c0_28], %78 {strides = array<i32>} : memref<64x32xf32, #tpu.memory_space<vmem>>, vector<8x32xf32>,
    %c2_i32 = arith.constant 2 : i32
    %c8_i32_29 = arith.constant 8 : i32
    %81 = arith.muli %c2_i32, %c8_i32_29 : i32
    %82 = tpu.assume_multiple %81, 8 : i32
    %83 = arith.index_cast %82 : i32 to index
    %c0_30 = arith.constant 0 : index
    %84 = vector.load %arg11[%83, %c0_30] : memref<64x128xf32, #tpu.memory_space<vmem>>, vector<8x128xf32>
    %85 = arith.addf %84, %9 : vector<8x128xf32>
    %cst_31 = arith.constant dense<0.000000e+00> : vector<8x128xf32>
    %86 = tpu.matmul %78, %10, %cst_31 {dimension_numbers = #tpu.dot_dimension_numbers<[1], [0], [0], [1], [0, 0, 1, 1], [], []>} : vector<8x32xf32>, vector<32x128xf32>, vector<8x128xf32> -> vector<8x128xf32>
    %87 = arith.addf %85, %86 : vector<8x128xf32>
    %88 = vector.extract_strided_slice %87 {offsets = [0, 0], sizes = [8, 32], strides = [1, 1]} : vector<8x128xf32> to vector<8x32xf32>
    %89 = arith.negf %88 : vector<8x32xf32>
    %90 = math.exp %89 : vector<8x32xf32>
    %cst_32 = arith.constant 1.000000e+00 : f32
    %91 = vector.broadcast %cst_32 : f32 to vector<8x32xf32>
    %92 = arith.addf %91, %90 : vector<8x32xf32>
    %93 = arith.divf %91, %92 : vector<8x32xf32>
    %94 = vector.extract_strided_slice %87 {offsets = [0, 32], sizes = [8, 32], strides = [1, 1]} : vector<8x128xf32> to vector<8x32xf32>
    %95 = arith.negf %94 : vector<8x32xf32>
    %96 = math.exp %95 : vector<8x32xf32>
    %cst_33 = arith.constant 1.000000e+00 : f32
    %97 = vector.broadcast %cst_33 : f32 to vector<8x32xf32>
    %98 = arith.addf %97, %96 : vector<8x32xf32>
    %99 = arith.divf %97, %98 : vector<8x32xf32>
    %100 = vector.extract_strided_slice %87 {offsets = [0, 64], sizes = [8, 32], strides = [1, 1]} : vector<8x128xf32> to vector<8x32xf32>
    %101 = math.tanh %100 : vector<8x32xf32>
    %102 = vector.extract_strided_slice %87 {offsets = [0, 96], sizes = [8, 32], strides = [1, 1]} : vector<8x128xf32> to vector<8x32xf32>
    %103 = arith.negf %102 : vector<8x32xf32>
    %104 = math.exp %103 : vector<8x32xf32>
    %cst_34 = arith.constant 1.000000e+00 : f32
    %105 = vector.broadcast %cst_34 : f32 to vector<8x32xf32>
    %106 = arith.addf %105, %104 : vector<8x32xf32>
    %107 = arith.divf %105, %106 : vector<8x32xf32>
    %108 = arith.mulf %99, %76 : vector<8x32xf32>
    %109 = arith.mulf %93, %101 : vector<8x32xf32>
    %110 = arith.addf %108, %109 : vector<8x32xf32>
    %111 = math.tanh %110 : vector<8x32xf32>
    %112 = arith.mulf %107, %111 : vector<8x32xf32>
    %113 = arith.index_cast %82 : i32 to index
    %c0_35 = arith.constant 0 : index
    %114 = vector.load %arg12[%113, %c0_35] : memref<64x32xf32, #tpu.memory_space<vmem>>, vector<8x32xf32>
    tpu.vector_store %arg12[%113, %c0_35], %112 {strides = array<i32>} : memref<64x32xf32, #tpu.memory_space<vmem>>, vector<8x32xf32>,
    %c3_i32 = arith.constant 3 : i32
    %c8_i32_36 = arith.constant 8 : i32
    %115 = arith.muli %c3_i32, %c8_i32_36 : i32
    %116 = tpu.assume_multiple %115, 8 : i32
    %117 = arith.index_cast %116 : i32 to index
    %c0_37 = arith.constant 0 : index
    %118 = vector.load %arg11[%117, %c0_37] : memref<64x128xf32, #tpu.memory_space<vmem>>, vector<8x128xf32>
    %119 = arith.addf %118, %9 : vector<8x128xf32>
    %cst_38 = arith.constant dense<0.000000e+00> : vector<8x128xf32>
    %120 = tpu.matmul %112, %10, %cst_38 {dimension_numbers = #tpu.dot_dimension_numbers<[1], [0], [0], [1], [0, 0, 1, 1], [], []>} : vector<8x32xf32>, vector<32x128xf32>, vector<8x128xf32> -> vector<8x128xf32>
    %121 = arith.addf %119, %120 : vector<8x128xf32>
    %122 = vector.extract_strided_slice %121 {offsets = [0, 0], sizes = [8, 32], strides = [1, 1]} : vector<8x128xf32> to vector<8x32xf32>
    %123 = arith.negf %122 : vector<8x32xf32>
    %124 = math.exp %123 : vector<8x32xf32>
    %cst_39 = arith.constant 1.000000e+00 : f32
    %125 = vector.broadcast %cst_39 : f32 to vector<8x32xf32>
    %126 = arith.addf %125, %124 : vector<8x32xf32>
    %127 = arith.divf %125, %126 : vector<8x32xf32>
    %128 = vector.extract_strided_slice %121 {offsets = [0, 32], sizes = [8, 32], strides = [1, 1]} : vector<8x128xf32> to vector<8x32xf32>
    %129 = arith.negf %128 : vector<8x32xf32>
    %130 = math.exp %129 : vector<8x32xf32>
    %cst_40 = arith.constant 1.000000e+00 : f32
    %131 = vector.broadcast %cst_40 : f32 to vector<8x32xf32>
    %132 = arith.addf %131, %130 : vector<8x32xf32>
    %133 = arith.divf %131, %132 : vector<8x32xf32>
    %134 = vector.extract_strided_slice %121 {offsets = [0, 64], sizes = [8, 32], strides = [1, 1]} : vector<8x128xf32> to vector<8x32xf32>
    %135 = math.tanh %134 : vector<8x32xf32>
    %136 = vector.extract_strided_slice %121 {offsets = [0, 96], sizes = [8, 32], strides = [1, 1]} : vector<8x128xf32> to vector<8x32xf32>
    %137 = arith.negf %136 : vector<8x32xf32>
    %138 = math.exp %137 : vector<8x32xf32>
    %cst_41 = arith.constant 1.000000e+00 : f32
    %139 = vector.broadcast %cst_41 : f32 to vector<8x32xf32>
    %140 = arith.addf %139, %138 : vector<8x32xf32>
    %141 = arith.divf %139, %140 : vector<8x32xf32>
    %142 = arith.mulf %133, %110 : vector<8x32xf32>
    %143 = arith.mulf %127, %135 : vector<8x32xf32>
    %144 = arith.addf %142, %143 : vector<8x32xf32>
    %145 = math.tanh %144 : vector<8x32xf32>
    %146 = arith.mulf %141, %145 : vector<8x32xf32>
    %147 = arith.index_cast %116 : i32 to index
    %c0_42 = arith.constant 0 : index
    %148 = vector.load %arg12[%147, %c0_42] : memref<64x32xf32, #tpu.memory_space<vmem>>, vector<8x32xf32>
    tpu.vector_store %arg12[%147, %c0_42], %146 {strides = array<i32>} : memref<64x32xf32, #tpu.memory_space<vmem>>, vector<8x32xf32>,
    %c4_i32 = arith.constant 4 : i32
    %c8_i32_43 = arith.constant 8 : i32
    %149 = arith.muli %c4_i32, %c8_i32_43 : i32
    %150 = tpu.assume_multiple %149, 8 : i32
    %151 = arith.index_cast %150 : i32 to index
    %c0_44 = arith.constant 0 : index
    %152 = vector.load %arg11[%151, %c0_44] : memref<64x128xf32, #tpu.memory_space<vmem>>, vector<8x128xf32>
    %153 = arith.addf %152, %9 : vector<8x128xf32>
    %cst_45 = arith.constant dense<0.000000e+00> : vector<8x128xf32>
    %154 = tpu.matmul %146, %10, %cst_45 {dimension_numbers = #tpu.dot_dimension_numbers<[1], [0], [0], [1], [0, 0, 1, 1], [], []>} : vector<8x32xf32>, vector<32x128xf32>, vector<8x128xf32> -> vector<8x128xf32>
    %155 = arith.addf %153, %154 : vector<8x128xf32>
    %156 = vector.extract_strided_slice %155 {offsets = [0, 0], sizes = [8, 32], strides = [1, 1]} : vector<8x128xf32> to vector<8x32xf32>
    %157 = arith.negf %156 : vector<8x32xf32>
    %158 = math.exp %157 : vector<8x32xf32>
    %cst_46 = arith.constant 1.000000e+00 : f32
    %159 = vector.broadcast %cst_46 : f32 to vector<8x32xf32>
    %160 = arith.addf %159, %158 : vector<8x32xf32>
    %161 = arith.divf %159, %160 : vector<8x32xf32>
    %162 = vector.extract_strided_slice %155 {offsets = [0, 32], sizes = [8, 32], strides = [1, 1]} : vector<8x128xf32> to vector<8x32xf32>
    %163 = arith.negf %162 : vector<8x32xf32>
    %164 = math.exp %163 : vector<8x32xf32>
    %cst_47 = arith.constant 1.000000e+00 : f32
    %165 = vector.broadcast %cst_47 : f32 to vector<8x32xf32>
    %166 = arith.addf %165, %164 : vector<8x32xf32>
    %167 = arith.divf %165, %166 : vector<8x32xf32>
    %168 = vector.extract_strided_slice %155 {offsets = [0, 64], sizes = [8, 32], strides = [1, 1]} : vector<8x128xf32> to vector<8x32xf32>
    %169 = math.tanh %168 : vector<8x32xf32>
    %170 = vector.extract_strided_slice %155 {offsets = [0, 96], sizes = [8, 32], strides = [1, 1]} : vector<8x128xf32> to vector<8x32xf32>
    %171 = arith.negf %170 : vector<8x32xf32>
    %172 = math.exp %171 : vector<8x32xf32>
    %cst_48 = arith.constant 1.000000e+00 : f32
    %173 = vector.broadcast %cst_48 : f32 to vector<8x32xf32>
    %174 = arith.addf %173, %172 : vector<8x32xf32>
    %175 = arith.divf %173, %174 : vector<8x32xf32>
    %176 = arith.mulf %167, %144 : vector<8x32xf32>
    %177 = arith.mulf %161, %169 : vector<8x32xf32>
    %178 = arith.addf %176, %177 : vector<8x32xf32>
    %179 = math.tanh %178 : vector<8x32xf32>
    %180 = arith.mulf %175, %179 : vector<8x32xf32>
    %181 = arith.index_cast %150 : i32 to index
    %c0_49 = arith.constant 0 : index
    %182 = vector.load %arg12[%181, %c0_49] : memref<64x32xf32, #tpu.memory_space<vmem>>, vector<8x32xf32>
    tpu.vector_store %arg12[%181, %c0_49], %180 {strides = array<i32>} : memref<64x32xf32, #tpu.memory_space<vmem>>, vector<8x32xf32>,
    %c5_i32 = arith.constant 5 : i32
    %c8_i32_50 = arith.constant 8 : i32
    %183 = arith.muli %c5_i32, %c8_i32_50 : i32
    %184 = tpu.assume_multiple %183, 8 : i32
    %185 = arith.index_cast %184 : i32 to index
    %c0_51 = arith.constant 0 : index
    %186 = vector.load %arg11[%185, %c0_51] : memref<64x128xf32, #tpu.memory_space<vmem>>, vector<8x128xf32>
    %187 = arith.addf %186, %9 : vector<8x128xf32>
    %cst_52 = arith.constant dense<0.000000e+00> : vector<8x128xf32>
    %188 = tpu.matmul %180, %10, %cst_52 {dimension_numbers = #tpu.dot_dimension_numbers<[1], [0], [0], [1], [0, 0, 1, 1], [], []>} : vector<8x32xf32>, vector<32x128xf32>, vector<8x128xf32> -> vector<8x128xf32>
    %189 = arith.addf %187, %188 : vector<8x128xf32>
    %190 = vector.extract_strided_slice %189 {offsets = [0, 0], sizes = [8, 32], strides = [1, 1]} : vector<8x128xf32> to vector<8x32xf32>
    %191 = arith.negf %190 : vector<8x32xf32>
    %192 = math.exp %191 : vector<8x32xf32>
    %cst_53 = arith.constant 1.000000e+00 : f32
    %193 = vector.broadcast %cst_53 : f32 to vector<8x32xf32>
    %194 = arith.addf %193, %192 : vector<8x32xf32>
    %195 = arith.divf %193, %194 : vector<8x32xf32>
    %196 = vector.extract_strided_slice %189 {offsets = [0, 32], sizes = [8, 32], strides = [1, 1]} : vector<8x128xf32> to vector<8x32xf32>
    %197 = arith.negf %196 : vector<8x32xf32>
    %198 = math.exp %197 : vector<8x32xf32>
    %cst_54 = arith.constant 1.000000e+00 : f32
    %199 = vector.broadcast %cst_54 : f32 to vector<8x32xf32>
    %200 = arith.addf %199, %198 : vector<8x32xf32>
    %201 = arith.divf %199, %200 : vector<8x32xf32>
    %202 = vector.extract_strided_slice %189 {offsets = [0, 64], sizes = [8, 32], strides = [1, 1]} : vector<8x128xf32> to vector<8x32xf32>
    %203 = math.tanh %202 : vector<8x32xf32>
    %204 = vector.extract_strided_slice %189 {offsets = [0, 96], sizes = [8, 32], strides = [1, 1]} : vector<8x128xf32> to vector<8x32xf32>
    %205 = arith.negf %204 : vector<8x32xf32>
    %206 = math.exp %205 : vector<8x32xf32>
    %cst_55 = arith.constant 1.000000e+00 : f32
    %207 = vector.broadcast %cst_55 : f32 to vector<8x32xf32>
    %208 = arith.addf %207, %206 : vector<8x32xf32>
    %209 = arith.divf %207, %208 : vector<8x32xf32>
    %210 = arith.mulf %201, %178 : vector<8x32xf32>
    %211 = arith.mulf %195, %203 : vector<8x32xf32>
    %212 = arith.addf %210, %211 : vector<8x32xf32>
    %213 = math.tanh %212 : vector<8x32xf32>
    %214 = arith.mulf %209, %213 : vector<8x32xf32>
    %215 = arith.index_cast %184 : i32 to index
    %c0_56 = arith.constant 0 : index
    %216 = vector.load %arg12[%215, %c0_56] : memref<64x32xf32, #tpu.memory_space<vmem>>, vector<8x32xf32>
    tpu.vector_store %arg12[%215, %c0_56], %214 {strides = array<i32>} : memref<64x32xf32, #tpu.memory_space<vmem>>, vector<8x32xf32>,
    %c6_i32 = arith.constant 6 : i32
    %c8_i32_57 = arith.constant 8 : i32
    %217 = arith.muli %c6_i32, %c8_i32_57 : i32
    %218 = tpu.assume_multiple %217, 8 : i32
    %219 = arith.index_cast %218 : i32 to index
    %c0_58 = arith.constant 0 : index
    %220 = vector.load %arg11[%219, %c0_58] : memref<64x128xf32, #tpu.memory_space<vmem>>, vector<8x128xf32>
    %221 = arith.addf %220, %9 : vector<8x128xf32>
    %cst_59 = arith.constant dense<0.000000e+00> : vector<8x128xf32>
    %222 = tpu.matmul %214, %10, %cst_59 {dimension_numbers = #tpu.dot_dimension_numbers<[1], [0], [0], [1], [0, 0, 1, 1], [], []>} : vector<8x32xf32>, vector<32x128xf32>, vector<8x128xf32> -> vector<8x128xf32>
    %223 = arith.addf %221, %222 : vector<8x128xf32>
    %224 = vector.extract_strided_slice %223 {offsets = [0, 0], sizes = [8, 32], strides = [1, 1]} : vector<8x128xf32> to vector<8x32xf32>
    %225 = arith.negf %224 : vector<8x32xf32>
    %226 = math.exp %225 : vector<8x32xf32>
    %cst_60 = arith.constant 1.000000e+00 : f32
    %227 = vector.broadcast %cst_60 : f32 to vector<8x32xf32>
    %228 = arith.addf %227, %226 : vector<8x32xf32>
    %229 = arith.divf %227, %228 : vector<8x32xf32>
    %230 = vector.extract_strided_slice %223 {offsets = [0, 32], sizes = [8, 32], strides = [1, 1]} : vector<8x128xf32> to vector<8x32xf32>
    %231 = arith.negf %230 : vector<8x32xf32>
    %232 = math.exp %231 : vector<8x32xf32>
    %cst_61 = arith.constant 1.000000e+00 : f32
    %233 = vector.broadcast %cst_61 : f32 to vector<8x32xf32>
    %234 = arith.addf %233, %232 : vector<8x32xf32>
    %235 = arith.divf %233, %234 : vector<8x32xf32>
    %236 = vector.extract_strided_slice %223 {offsets = [0, 64], sizes = [8, 32], strides = [1, 1]} : vector<8x128xf32> to vector<8x32xf32>
    %237 = math.tanh %236 : vector<8x32xf32>
    %238 = vector.extract_strided_slice %223 {offsets = [0, 96], sizes = [8, 32], strides = [1, 1]} : vector<8x128xf32> to vector<8x32xf32>
    %239 = arith.negf %238 : vector<8x32xf32>
    %240 = math.exp %239 : vector<8x32xf32>
    %cst_62 = arith.constant 1.000000e+00 : f32
    %241 = vector.broadcast %cst_62 : f32 to vector<8x32xf32>
    %242 = arith.addf %241, %240 : vector<8x32xf32>
    %243 = arith.divf %241, %242 : vector<8x32xf32>
    %244 = arith.mulf %235, %212 : vector<8x32xf32>
    %245 = arith.mulf %229, %237 : vector<8x32xf32>
    %246 = arith.addf %244, %245 : vector<8x32xf32>
    %247 = math.tanh %246 : vector<8x32xf32>
    %248 = arith.mulf %243, %247 : vector<8x32xf32>
    %249 = arith.index_cast %218 : i32 to index
    %c0_63 = arith.constant 0 : index
    %250 = vector.load %arg12[%249, %c0_63] : memref<64x32xf32, #tpu.memory_space<vmem>>, vector<8x32xf32>
    tpu.vector_store %arg12[%249, %c0_63], %248 {strides = array<i32>} : memref<64x32xf32, #tpu.memory_space<vmem>>, vector<8x32xf32>,
    %c7_i32 = arith.constant 7 : i32
    %c8_i32_64 = arith.constant 8 : i32
    %251 = arith.muli %c7_i32, %c8_i32_64 : i32
    %252 = tpu.assume_multiple %251, 8 : i32
    %253 = arith.index_cast %252 : i32 to index
    %c0_65 = arith.constant 0 : index
    %254 = vector.load %arg11[%253, %c0_65] : memref<64x128xf32, #tpu.memory_space<vmem>>, vector<8x128xf32>
    %255 = arith.addf %254, %9 : vector<8x128xf32>
    %cst_66 = arith.constant dense<0.000000e+00> : vector<8x128xf32>
    %256 = tpu.matmul %248, %10, %cst_66 {dimension_numbers = #tpu.dot_dimension_numbers<[1], [0], [0], [1], [0, 0, 1, 1], [], []>} : vector<8x32xf32>, vector<32x128xf32>, vector<8x128xf32> -> vector<8x128xf32>
    %257 = arith.addf %255, %256 : vector<8x128xf32>
    %258 = vector.extract_strided_slice %257 {offsets = [0, 0], sizes = [8, 32], strides = [1, 1]} : vector<8x128xf32> to vector<8x32xf32>
    %259 = arith.negf %258 : vector<8x32xf32>
    %260 = math.exp %259 : vector<8x32xf32>
    %cst_67 = arith.constant 1.000000e+00 : f32
    %261 = vector.broadcast %cst_67 : f32 to vector<8x32xf32>
    %262 = arith.addf %261, %260 : vector<8x32xf32>
    %263 = arith.divf %261, %262 : vector<8x32xf32>
    %264 = vector.extract_strided_slice %257 {offsets = [0, 32], sizes = [8, 32], strides = [1, 1]} : vector<8x128xf32> to vector<8x32xf32>
    %265 = arith.negf %264 : vector<8x32xf32>
    %266 = math.exp %265 : vector<8x32xf32>
    %cst_68 = arith.constant 1.000000e+00 : f32
    %267 = vector.broadcast %cst_68 : f32 to vector<8x32xf32>
    %268 = arith.addf %267, %266 : vector<8x32xf32>
    %269 = arith.divf %267, %268 : vector<8x32xf32>
    %270 = vector.extract_strided_slice %257 {offsets = [0, 64], sizes = [8, 32], strides = [1, 1]} : vector<8x128xf32> to vector<8x32xf32>
    %271 = math.tanh %270 : vector<8x32xf32>
    %272 = vector.extract_strided_slice %257 {offsets = [0, 96], sizes = [8, 32], strides = [1, 1]} : vector<8x128xf32> to vector<8x32xf32>
    %273 = arith.negf %272 : vector<8x32xf32>
    %274 = math.exp %273 : vector<8x32xf32>
    %cst_69 = arith.constant 1.000000e+00 : f32
    %275 = vector.broadcast %cst_69 : f32 to vector<8x32xf32>
    %276 = arith.addf %275, %274 : vector<8x32xf32>
    %277 = arith.divf %275, %276 : vector<8x32xf32>
    %278 = arith.mulf %269, %246 : vector<8x32xf32>
    %279 = arith.mulf %263, %271 : vector<8x32xf32>
    %280 = arith.addf %278, %279 : vector<8x32xf32>
    %281 = math.tanh %280 : vector<8x32xf32>
    %282 = arith.mulf %277, %281 : vector<8x32xf32>
    %283 = arith.index_cast %252 : i32 to index
    %c0_70 = arith.constant 0 : index
    %284 = vector.load %arg12[%283, %c0_70] : memref<64x32xf32, #tpu.memory_space<vmem>>, vector<8x32xf32>
    tpu.vector_store %arg12[%283, %c0_70], %282 {strides = array<i32>} : memref<64x32xf32, #tpu.memory_space<vmem>>, vector<8x32xf32>,
    %c8_i32_71 = arith.constant 8 : i32
    %c0_72 = arith.constant 0 : index
    %c0_73 = arith.constant 0 : index
    %285 = vector.load %arg12[%c0_72, %c0_73] : memref<64x32xf32, #tpu.memory_space<vmem>>, vector<64x32xf32>
    %c0_74 = arith.constant 0 : index
    %c0_75 = arith.constant 0 : index
    %286 = vector.load %arg6[%c0_74, %c0_75] : memref<32x128xf32, #tpu.memory_space<vmem>>, vector<32x128xf32>
    %cst_76 = arith.constant dense<0.000000e+00> : vector<64x128xf32>
    %287 = tpu.matmul %285, %286, %cst_76 {dimension_numbers = #tpu.dot_dimension_numbers<[1], [0], [0], [1], [0, 0, 1, 1], [], []>} : vector<64x32xf32>, vector<32x128xf32>, vector<64x128xf32> -> vector<64x128xf32>
    %c0_77 = arith.constant 0 : index
    %c0_78 = arith.constant 0 : index
    %288 = vector.load %arg7[%c0_77, %c0_78] : memref<1x128xf32, #tpu.memory_space<vmem>>, vector<1x128xf32>
    %289 = vector.broadcast %288 : vector<1x128xf32> to vector<64x128xf32>
    %290 = arith.addf %287, %289 : vector<64x128xf32>
    %cst_79 = arith.constant dense<0xFF800000> : vector<64xf32>
    %291 = vector.multi_reduction <maximumf>, %290, %cst_79 [1] : vector<64x128xf32> to vector<64xf32>
    %292 = vector.shape_cast %291 : vector<64xf32> to vector<64x1xf32>
    %293 = vector.broadcast %292 : vector<64x1xf32> to vector<64x128xf32>
    %294 = arith.subf %290, %293 : vector<64x128xf32>
    %295 = math.exp %294 : vector<64x128xf32>
    %cst_80 = arith.constant dense<0.000000e+00> : vector<64xf32>
    %296 = vector.multi_reduction <add>, %295, %cst_80 [1] : vector<64x128xf32> to vector<64xf32>
    %297 = vector.shape_cast %296 : vector<64xf32> to vector<64x1xf32>
    %298 = math.log %297 : vector<64x1xf32>
    %299 = arith.addf %292, %298 : vector<64x1xf32>
    %300 = tpu.iota {dimensions = array<i32: 1>} : vector<64x128xi32>
    %c0_81 = arith.constant 0 : index
    %c0_82 = arith.constant 0 : index
    %301 = vector.load %arg8[%c0_81, %c0_82] : memref<64x1xi32, #tpu.memory_space<vmem>>, vector<64x1xi32>
    %302 = vector.broadcast %301 : vector<64x1xi32> to vector<64x128xi32>
    %303 = arith.cmpi eq, %300, %302 : vector<64x128xi32>
    %cst_83 = arith.constant 0.000000e+00 : f32
    %304 = vector.broadcast %cst_83 : f32 to vector<64x128xf32>
    %305 = arith.select %303, %290, %304 : vector<64x128xi1>, vector<64x128xf32>
    %cst_84 = arith.constant dense<0.000000e+00> : vector<64xf32>
    %306 = vector.multi_reduction <add>, %305, %cst_84 [1] : vector<64x128xf32> to vector<64xf32>
    %307 = vector.shape_cast %306 : vector<64xf32> to vector<64x1xf32>
    %308 = arith.subf %299, %307 : vector<64x1xf32>
    %c0_85 = arith.constant 0 : index
    %c0_86 = arith.constant 0 : index
    %309 = vector.load %arg9[%c0_85, %c0_86] : memref<64x1xf32, #tpu.memory_space<vmem>>, vector<64x1xf32>
    %310 = arith.mulf %308, %309 : vector<64x1xf32>
    %311 = vector.extract_strided_slice %310 {offsets = [0, 0], sizes = [8, 1], strides = [1, 1]} : vector<64x1xf32> to vector<8x1xf32>
    %312 = vector.extract_strided_slice %310 {offsets = [8, 0], sizes = [8, 1], strides = [1, 1]} : vector<64x1xf32> to vector<8x1xf32>
    %313 = arith.addf %311, %312 : vector<8x1xf32>
    %314 = vector.extract_strided_slice %310 {offsets = [16, 0], sizes = [8, 1], strides = [1, 1]} : vector<64x1xf32> to vector<8x1xf32>
    %315 = arith.addf %313, %314 : vector<8x1xf32>
    %316 = vector.extract_strided_slice %310 {offsets = [24, 0], sizes = [8, 1], strides = [1, 1]} : vector<64x1xf32> to vector<8x1xf32>
    %317 = arith.addf %315, %316 : vector<8x1xf32>
    %318 = vector.extract_strided_slice %310 {offsets = [32, 0], sizes = [8, 1], strides = [1, 1]} : vector<64x1xf32> to vector<8x1xf32>
    %319 = arith.addf %317, %318 : vector<8x1xf32>
    %320 = vector.extract_strided_slice %310 {offsets = [40, 0], sizes = [8, 1], strides = [1, 1]} : vector<64x1xf32> to vector<8x1xf32>
    %321 = arith.addf %319, %320 : vector<8x1xf32>
    %322 = vector.extract_strided_slice %310 {offsets = [48, 0], sizes = [8, 1], strides = [1, 1]} : vector<64x1xf32> to vector<8x1xf32>
    %323 = arith.addf %321, %322 : vector<8x1xf32>
    %324 = vector.extract_strided_slice %310 {offsets = [56, 0], sizes = [8, 1], strides = [1, 1]} : vector<64x1xf32> to vector<8x1xf32>
    %325 = arith.addf %323, %324 : vector<8x1xf32>
    %c0_87 = arith.constant 0 : index
    %c0_88 = arith.constant 0 : index
    %326 = vector.load %arg10[%c0_87, %c0_88] : memref<8x1xf32, #tpu.memory_space<vmem>>, vector<8x1xf32>
    tpu.vector_store %arg10[%c0_87, %c0_88], %325 {strides = array<i32>} : memref<8x1xf32, #tpu.memory_space<vmem>>, vector<8x1xf32>,
    return
  }
}

</mosaic_0001>

<llo_original>
// kernel: tpu_custom_call.1
$region0: #{tpu_custom_call.1}
  #allocation0 [shape = 'u32[]', space=smem, size = 0x4, offset = 0x4, fixed_abs, tag = 'smem constant byte address 0x4 - core index']
  #allocation1 [shape = 'u32[144,128]{1,0:T(1,128)}', space=vmem, size = 0x12000, scoped, tag = 'internal scratch']
  #allocation2 [shape = 'f32[64,128]{1,0:T(8,128)}', space=vmem, size = 0x8000, scoped, tag = 'scratch operand']
  #allocation3 [shape = 'f32[64,32]{1,0:T(8,128)}', space=vmem, size = 0x8000, scoped, tag = 'scratch operand']
  %s0 = inlined_call_operand.vmem [shape: f32[64,16], index: 0, kind: input, shape index: {}]
  %s1 = inlined_call_operand.vmem [shape: f32[8,16], index: 1, kind: input, shape index: {}]
  %s2 = inlined_call_operand.vmem [shape: f32[16,128], index: 2, kind: input, shape index: {}]
  %s3 = inlined_call_operand.vmem [shape: f32[16,128], index: 3, kind: input, shape index: {}]
  %s4 = inlined_call_operand.vmem [shape: f32[1,128], index: 4, kind: input, shape index: {}]
  %s5 = inlined_call_operand.vmem [shape: f32[32,128], index: 5, kind: input, shape index: {}]
  %s6 = inlined_call_operand.vmem [shape: f32[32,128], index: 6, kind: input, shape index: {}]
  %s7 = inlined_call_operand.vmem [shape: f32[1,128], index: 7, kind: input, shape index: {}]
  %s8 = inlined_call_operand.vmem [shape: s32[64,1], index: 8, kind: input, shape index: {}]
  %s9 = inlined_call_operand.vmem [shape: f32[64,1], index: 9, kind: input, shape index: {}]
  %s10 = inlined_call_operand.vmem [shape: f32[8,1], index: 10, kind: output, shape index: {}]
  %s11 = sld [smem:[#allocation0]]
  $region50: #{tpu_custom_call.1} parent=0
    _
  %s13 = ssub.s32 1, %s11
  %s14 = scalar_select 0, %s13, %s11
  // Predicated region
  $region2: #{tpu_custom_call.1} parent=0 // pred_check
    _
  $region3: #{tpu_custom_call.1} parent=0 // pred_check_branch
    %16 = sbr.rel (0) target = $region5
  $region4: #{tpu_custom_call.1} parent=0 // pred_region
    _
  $region5: #{tpu_custom_call.1} parent=0 // pred_fallthru
    _
  // Predicated region
  $region6: #{tpu_custom_call.1} parent=0 // pred_check
    _
  $region7: #{tpu_custom_call.1} parent=0 // pred_check_branch
    %18 = sbr.rel (0) target = $region9
  $region8: #{tpu_custom_call.1} parent=0 // pred_region
    _
  $region9: #{tpu_custom_call.1} parent=0 // pred_fallthru
    _
  // Predicated region
  $region10: #{tpu_custom_call.1} parent=0 // pred_check
    _
  $region11: #{tpu_custom_call.1} parent=0 // pred_check_branch
    %20 = sbr.rel (0) target = $region13
  $region12: #{tpu_custom_call.1} parent=0 // pred_region
    _
  $region13: #{tpu_custom_call.1} parent=0 // pred_fallthru
    _
  // Predicated region
  $region14: #{tpu_custom_call.1} parent=0 // pred_check
    _
  $region15: #{tpu_custom_call.1} parent=0 // pred_check_branch
    %22 = sbr.rel (0) target = $region17
  $region16: #{tpu_custom_call.1} parent=0 // pred_region
    _
  $region17: #{tpu_custom_call.1} parent=0 // pred_fallthru
    _
  // Predicated region
  $region18: #{tpu_custom_call.1} parent=0 // pred_check
    _
  $region19: #{tpu_custom_call.1} parent=0 // pred_check_branch
    %24 = sbr.rel (0) target = $region21
  $region20: #{tpu_custom_call.1} parent=0 // pred_region
    _
  $region21: #{tpu_custom_call.1} parent=0 // pred_fallthru
    _
  // Predicated region
  $region22: #{tpu_custom_call.1} parent=0 // pred_check
    _
  $region23: #{tpu_custom_call.1} parent=0 // pred_check_branch
    %26 = sbr.rel (0) target = $region25
  $region24: #{tpu_custom_call.1} parent=0 // pred_region
    _
  $region25: #{tpu_custom_call.1} parent=0 // pred_fallthru
    _
  // Predicated region
  $region26: #{tpu_custom_call.1} parent=0 // pred_check
    _
  $region27: #{tpu_custom_call.1} parent=0 // pred_check_branch
    %28 = sbr.rel (0) target = $region29
  $region28: #{tpu_custom_call.1} parent=0 // pred_region
    _
  $region29: #{tpu_custom_call.1} parent=0 // pred_fallthru
    _
  // Predicated region
  $region30: #{tpu_custom_call.1} parent=0 // pred_check
    _
  $region31: #{tpu_custom_call.1} parent=0 // pred_check_branch
    %30 = sbr.rel (0) target = $region33
  $region32: #{tpu_custom_call.1} parent=0 // pred_region
    _
  $region33: #{tpu_custom_call.1} parent=0 // pred_fallthru
    _
  // Predicated region
  $region34: #{tpu_custom_call.1} parent=0 // pred_check
    _
  $region35: #{tpu_custom_call.1} parent=0 // pred_check_branch
    %32 = sbr.rel (0) target = $region37
  $region36: #{tpu_custom_call.1} parent=0 // pred_region
    _
  $region37: #{tpu_custom_call.1} parent=0 // pred_fallthru
    _
  // Predicated region
  $region38: #{tpu_custom_call.1} parent=0 // pred_check
    _
  $region39: #{tpu_custom_call.1} parent=0 // pred_check_branch
    %34 = sbr.rel (0) target = $region41
  $region40: #{tpu_custom_call.1} parent=0 // pred_region
    _
  $region41: #{tpu_custom_call.1} parent=0 // pred_fallthru
    _
  %v35 = vld [vmem:[%s0] sm:$0xff]
  %v36 = vld [vmem:[%s0 + $0x8] sm:$0xff]
  %v37 = vld [vmem:[%s0 + $0x10] sm:$0xff]
  %v38 = vld [vmem:[%s0 + $0x18] sm:$0xff]
  %v39 = vld [vmem:[%s0 + $0x20] sm:$0xff]
  %v40 = vld [vmem:[%s0 + $0x28] sm:$0xff]
  %v41 = vld [vmem:[%s0 + $0x30] sm:$0xff]
  %v42 = vld [vmem:[%s0 + $0x38] sm:$0xff]
  %v43 = vld [vmem:[%s2] sm:$0xff]
  %v44 = vld [vmem:[%s2 + $0x8] sm:$0xff]
  %vm45 = vcmask 130048
  %v47 = vsel %vm45, %v35, 0
  %v50 = vsel %vm45, %v36, 0
  %v53 = vsel %vm45, %v37, 0
  %v56 = vsel %vm45, %v38, 0
  %v59 = vsel %vm45, %v39, 0
  %v62 = vsel %vm45, %v40, 0
  %v65 = vsel %vm45, %v41, 0
  %v68 = vsel %vm45, %v42, 0
  %70 = vmatprep.subr.mxu0 0.0
  %71 = vmatpush1.msra.mxu0 0.0
  %72 = vmatprep.subr.mxu0 0.0
  %73 = vmatpush1.msra.mxu0 0.0
  %74 = vmatprep.subr.mxu0 0.0
  %75 = vmatpush1.msra.mxu0 0.0
  %76 = vmatprep.subr.mxu0 0.0
  %77 = vmatpush1.msra.mxu0 0.0
  %78 = vmatprep.subr.mxu0 0.0
  %79 = vmatpush1.msra.mxu0 0.0
  %80 = vmatprep.subr.mxu0 0.0
  %81 = vmatpush1.msra.mxu0 0.0
  %82 = vmatprep.subr.mxu0 0.0
  %83 = vmatpush1.msra.mxu0 0.0
  %84 = vmatprep.subr.mxu0 0.0
  %85 = vmatpush1.msra.mxu0 0.0
  %86 = vmatprep.subr.mxu0 0.0
  %87 = vmatpush1.msra.mxu0 0.0
  %88 = vmatprep.subr.mxu0 0.0
  %89 = vmatpush1.msra.mxu0 0.0
  %90 = vmatprep.subr.mxu0 0.0
  %91 = vmatpush1.msra.mxu0 0.0
  %92 = vmatprep.subr.mxu0 0.0
  %93 = vmatpush1.msra.mxu0 0.0
  %94 = vmatprep.subr.mxu0 0.0
  %95 = vmatpush1.msra.mxu0 0.0
  %96 = vmatprep.subr.mxu0 0.0
  %97 = vmatpush1.msra.mxu0 0.0
  %98 = vmatprep.subr.mxu0 0.0
  %99 = vmatpush1.msra.mxu0 %v44
  %100 = vmatprep.subr.mxu0 0.0
  %101 = vmatpush1.msra.mxu0 %v43
  %102 = vmatprep.subr.mxu0 0.0
  %103 = vmatpush2.msra.mxu0 0.0
  %104 = vmatprep.subr.mxu0 0.0
  %105 = vmatpush2.msra.mxu0 0.0
  %106 = vmatprep.subr.mxu0 0.0
  %107 = vmatpush2.msra.mxu0 0.0
  %108 = vmatprep.subr.mxu0 0.0
  %109 = vmatpush2.msra.mxu0 0.0
  %110 = vmatprep.subr.mxu0 0.0
  %111 = vmatpush2.msra.mxu0 0.0
  %112 = vmatprep.subr.mxu0 0.0
  %113 = vmatpush2.msra.mxu0 0.0
  %114 = vmatprep.subr.mxu0 0.0
  %115 = vmatpush2.msra.mxu0 0.0
  %116 = vmatprep.subr.mxu0 0.0
  %117 = vmatpush2.msra.mxu0 0.0
  %118 = vmatprep.subr.mxu0 0.0
  %119 = vmatpush2.msra.mxu0 0.0
  %120 = vmatprep.subr.mxu0 0.0
  %121 = vmatpush2.msra.mxu0 0.0
  %122 = vmatprep.subr.mxu0 0.0
  %123 = vmatpush2.msra.mxu0 0.0
  %124 = vmatprep.subr.mxu0 0.0
  %125 = vmatpush2.msra.mxu0 0.0
  %126 = vmatprep.subr.mxu0 0.0
  %127 = vmatpush2.msra.mxu0 0.0
  %128 = vmatprep.subr.mxu0 0.0
  %129 = vmatpush2.msra.mxu0 0.0
  %130 = vmatprep.subr.mxu0 0.0
  %131 = vmatpush2.msra.mxu0 0.0
  %132 = vmatprep.subr.mxu0 0.0
  %133 = vmatpush2.msra.mxu0 0.0
  %134 = vmatprep.mubr.f32.mxu0 0.0
  %135 = vmatmul.mubr.f32.gmra.mxu0 %v47
  %v136 = vpop.f32.mrf.mxu0
  %v137 = vadd.f32 0.0, %v136
  %v138 = vpop.f32.mrf.mxu0
  %139 = vmatprep.mubr.f32.mxu0 0.0
  %140 = vmatmul.mubr.f32.gmra.mxu0 %v50
  %v141 = vpop.f32.mrf.mxu0
  %v142 = vadd.f32 0.0, %v141
  %v143 = vpop.f32.mrf.mxu0
  %144 = vmatprep.mubr.f32.mxu0 0.0
  %145 = vmatmul.mubr.f32.gmra.mxu0 %v53
  %v146 = vpop.f32.mrf.mxu0
  %v147 = vadd.f32 0.0, %v146
  %v148 = vpop.f32.mrf.mxu0
  %149 = vmatprep.mubr.f32.mxu0 0.0
  %150 = vmatmul.mubr.f32.gmra.mxu0 %v56
  %v151 = vpop.f32.mrf.mxu0
  %v152 = vadd.f32 0.0, %v151
  %v153 = vpop.f32.mrf.mxu0
  %154 = vmatprep.mubr.f32.mxu0 0.0
  %155 = vmatmul.mubr.f32.gmra.mxu0 %v59
  %v156 = vpop.f32.mrf.mxu0
  %v157 = vadd.f32 0.0, %v156
  %v158 = vpop.f32.mrf.mxu0
  %159 = vmatprep.mubr.f32.mxu0 0.0
  %160 = vmatmul.mubr.f32.gmra.mxu0 %v62
  %v161 = vpop.f32.mrf.mxu0
  %v162 = vadd.f32 0.0, %v161
  %v163 = vpop.f32.mrf.mxu0
  %164 = vmatprep.mubr.f32.mxu0 0.0
  %165 = vmatmul.mubr.f32.gmra.mxu0 %v65
  %v166 = vpop.f32.mrf.mxu0
  %v167 = vadd.f32 0.0, %v166
  %v168 = vpop.f32.mrf.mxu0
  %169 = vmatprep.mubr.f32.mxu0 0.0
  %170 = vmatmul.mubr.f32.gmra.mxu0 %v68
  %v171 = vpop.f32.mrf.mxu0
  %v172 = vadd.f32 0.0, %v171
  %v173 = vpop.f32.mrf.mxu0
  %174 = vdwg.mxu0
  %175 = vst [vmem:[#allocation2] sm:$0xff] %v137
  %176 = vst [vmem:[#allocation2 + $0x8] sm:$0xff] %v142
  %177 = vst [vmem:[#allocation2 + $0x10] sm:$0xff] %v147
  %178 = vst [vmem:[#allocation2 + $0x18] sm:$0xff] %v152
  %179 = vst [vmem:[#allocation2 + $0x20] sm:$0xff] %v157
  %180 = vst [vmem:[#allocation2 + $0x28] sm:$0xff] %v162
  %181 = vst [vmem:[#allocation2 + $0x30] sm:$0xff] %v167
  %182 = vst [vmem:[#allocation2 + $0x38] sm:$0xff] %v172
  %v183 = vld [vmem:[%s1] sm:$0xff]
  %v184 = vld [vmem:[%s3] sm:$0xff]
  %v185 = vld [vmem:[%s3 + $0x8] sm:$0xff]
  %v186 = vld [vmem:[%s4] sm:$0x1]
  %v188 = vlaneseq
  %v189 = vshrl.u32 %v188, 7
  %v190 = vsub.s32 0, %v189
  %v191 = vrot.slane %v186, %v190
  %v194 = vsel %vm45, %v183, 0
  %196 = vmatprep.subr.mxu0 0.0
  %197 = vmatpush1.msra.mxu0 0.0
  %198 = vmatprep.subr.mxu0 0.0
  %199 = vmatpush1.msra.mxu0 0.0
  %200 = vmatprep.subr.mxu0 0.0
  %201 = vmatpush1.msra.mxu0 0.0
  %202 = vmatprep.subr.mxu0 0.0
  %203 = vmatpush1.msra.mxu0 0.0
  %204 = vmatprep.subr.mxu0 0.0
  %205 = vmatpush1.msra.mxu0 0.0
  %206 = vmatprep.subr.mxu0 0.0
  %207 = vmatpush1.msra.mxu0 0.0
  %208 = vmatprep.subr.mxu0 0.0
  %209 = vmatpush1.msra.mxu0 0.0
  %210 = vmatprep.subr.mxu0 0.0
  %211 = vmatpush1.msra.mxu0 0.0
  %212 = vmatprep.subr.mxu0 0.0
  %213 = vmatpush1.msra.mxu0 0.0
  %214 = vmatprep.subr.mxu0 0.0
  %215 = vmatpush1.msra.mxu0 0.0
  %216 = vmatprep.subr.mxu0 0.0
  %217 = vmatpush1.msra.mxu0 0.0
  %218 = vmatprep.subr.mxu0 0.0
  %219 = vmatpush1.msra.mxu0 0.0
  %220 = vmatprep.subr.mxu0 0.0
  %221 = vmatpush1.msra.mxu0 0.0
  %222 = vmatprep.subr.mxu0 0.0
  %223 = vmatpush1.msra.mxu0 0.0
  %224 = vmatprep.subr.mxu0 0.0
  %225 = vmatpush1.msra.mxu0 %v185
  %226 = vmatprep.subr.mxu0 0.0
  %227 = vmatpush1.msra.mxu0 %v184
  %228 = vmatprep.subr.mxu0 0.0
  %229 = vmatpush2.msra.mxu0 0.0
  %230 = vmatprep.subr.mxu0 0.0
  %231 = vmatpush2.msra.mxu0 0.0
  %232 = vmatprep.subr.mxu0 0.0
  %233 = vmatpush2.msra.mxu0 0.0
  %234 = vmatprep.subr.mxu0 0.0
  %235 = vmatpush2.msra.mxu0 0.0
  %236 = vmatprep.subr.mxu0 0.0
  %237 = vmatpush2.msra.mxu0 0.0
  %238 = vmatprep.subr.mxu0 0.0
  %239 = vmatpush2.msra.mxu0 0.0
  %240 = vmatprep.subr.mxu0 0.0
  %241 = vmatpush2.msra.mxu0 0.0
  %242 = vmatprep.subr.mxu0 0.0
  %243 = vmatpush2.msra.mxu0 0.0
  %244 = vmatprep.subr.mxu0 0.0
  %245 = vmatpush2.msra.mxu0 0.0
  %246 = vmatprep.subr.mxu0 0.0
  %247 = vmatpush2.msra.mxu0 0.0
  %248 = vmatprep.subr.mxu0 0.0
  %249 = vmatpush2.msra.mxu0 0.0
  %250 = vmatprep.subr.mxu0 0.0
  %251 = vmatpush2.msra.mxu0 0.0
  %252 = vmatprep.subr.mxu0 0.0
  %253 = vmatpush2.msra.mxu0 0.0
  %254 = vmatprep.subr.mxu0 0.0
  %255 = vmatpush2.msra.mxu0 0.0
  %256 = vmatprep.subr.mxu0 0.0
  %257 = vmatpush2.msra.mxu0 0.0
  %258 = vmatprep.subr.mxu0 0.0
  %259 = vmatpush2.msra.mxu0 0.0
  %260 = vmatprep.mubr.f32.mxu0 0.0
  %261 = vmatmul.mubr.f32.gmra.mxu0 %v194
  %v262 = vpop.f32.mrf.mxu0
  %v263 = vadd.f32 %v191, %v262
  %v264 = vpop.f32.mrf.mxu0
  %265 = vdwg.mxu0
  %v266 = vld [vmem:[%s5] sm:$0xff]
  %v267 = vld [vmem:[%s5 + $0x8] sm:$0xff]
  %v268 = vld [vmem:[%s5 + $0x10] sm:$0xff]
  %v269 = vld [vmem:[%s5 + $0x18] sm:$0xff]
  %v270 = vld [vmem:[#allocation2] sm:$0xff]
  %v271 = vadd.f32 %v270, %v263
  %vm272 = vcmask 261120
  %v274 = vsel %vm272, 0.0, 0
  %276 = vmatprep.subr.mxu0 0.0
  %277 = vmatpush1.msra.mxu0 0.0
  %278 = vmatprep.subr.mxu0 0.0
  %279 = vmatpush1.msra.mxu0 0.0
  %280 = vmatprep.subr.mxu0 0.0
  %281 = vmatpush1.msra.mxu0 0.0
  %282 = vmatprep.subr.mxu0 0.0
  %283 = vmatpush1.msra.mxu0 0.0
  %284 = vmatprep.subr.mxu0 0.0
  %285 = vmatpush1.msra.mxu0 0.0
  %286 = vmatprep.subr.mxu0 0.0
  %287 = vmatpush1.msra.mxu0 0.0
  %288 = vmatprep.subr.mxu0 0.0
  %289 = vmatpush1.msra.mxu0 0.0
  %290 = vmatprep.subr.mxu0 0.0
  %291 = vmatpush1.msra.mxu0 0.0
  %292 = vmatprep.subr.mxu0 0.0
  %293 = vmatpush1.msra.mxu0 0.0
  %294 = vmatprep.subr.mxu0 0.0
  %295 = vmatpush1.msra.mxu0 0.0
  %296 = vmatprep.subr.mxu0 0.0
  %297 = vmatpush1.msra.mxu0 0.0
  %298 = vmatprep.subr.mxu0 0.0
  %299 = vmatpush1.msra.mxu0 0.0
  %300 = vmatprep.subr.mxu0 0.0
  %301 = vmatpush1.msra.mxu0 %v269
  %302 = vmatprep.subr.mxu0 0.0
  %303 = vmatpush1.msra.mxu0 %v268
  %304 = vmatprep.subr.mxu0 0.0
  %305 = vmatpush1.msra.mxu0 %v267
  %306 = vmatprep.subr.mxu0 0.0
  %307 = vmatpush1.msra.mxu0 %v266
  %308 = vmatprep.subr.mxu0 0.0
  %309 = vmatpush2.msra.mxu0 0.0
  %310 = vmatprep.subr.mxu0 0.0
  %311 = vmatpush2.msra.mxu0 0.0
  %312 = vmatprep.subr.mxu0 0.0
  %313 = vmatpush2.msra.mxu0 0.0
  %314 = vmatprep.subr.mxu0 0.0
  %315 = vmatpush2.msra.mxu0 0.0
  %316 = vmatprep.subr.mxu0 0.0
  %317 = vmatpush2.msra.mxu0 0.0
  %318 = vmatprep.subr.mxu0 0.0
  %319 = vmatpush2.msra.mxu0 0.0
  %320 = vmatprep.subr.mxu0 0.0
  %321 = vmatpush2.msra.mxu0 0.0
  %322 = vmatprep.subr.mxu0 0.0
  %323 = vmatpush2.msra.mxu0 0.0
  %324 = vmatprep.subr.mxu0 0.0
  %325 = vmatpush2.msra.mxu0 0.0
  %326 = vmatprep.subr.mxu0 0.0
  %327 = vmatpush2.msra.mxu0 0.0
  %328 = vmatprep.subr.mxu0 0.0
  %329 = vmatpush2.msra.mxu0 0.0
  %330 = vmatprep.subr.mxu0 0.0
  %331 = vmatpush2.msra.mxu0 0.0
  %332 = vmatprep.subr.mxu0 0.0
  %333 = vmatpush2.msra.mxu0 0.0
  %334 = vmatprep.subr.mxu0 0.0
  %335 = vmatpush2.msra.mxu0 0.0
  %336 = vmatprep.subr.mxu0 0.0
  %337 = vmatpush2.msra.mxu0 0.0
  %338 = vmatprep.subr.mxu0 0.0
  %339 = vmatpush2.msra.mxu0 0.0
  %340 = vmatprep.mubr.f32.mxu0 0.0
  %341 = vmatmul.mubr.f32.gmra.mxu0 %v274
  %v342 = vpop.f32.mrf.mxu0
  %v343 = vadd.f32 0.0, %v342
  %v344 = vpop.f32.mrf.mxu0
  %345 = vdwg.mxu0
  %v346 = vadd.f32 %v271, %v343
  %v347 = vxor.u32 %v346, 2147483648
  %v348 = vmul.f32 %v347, 1.442695
  %v349 = vpow.pop %v348
  %v350 = vadd.f32 %v349, 1.0
  %v351 = vrcp.pop %v350
  %v352 = vmul.f32 1.0, %v351
  %v353 = vtanh.pop %v346
  %v354 = vmul.f32 %v352, 0.0
  %356 = vrot.lane.b32.xlu0 %v353, 64
  %v357 = vpop.permute.xlu0 %356
  %v359 = vmul.f32 %v352, %v357
  %361 = vrot.lane.b32.xlu0 %v359, 32
  %v362 = vpop.permute.xlu0 %361
  %v364 = vadd.f32 %v354, %v362
  %v365 = vtanh.pop %v364
  %367 = vrot.lane.b32.xlu0 %v365, 64
  %v368 = vpop.permute.xlu0 %367
  %v370 = vmul.f32 %v352, %v368
  %372 = vrot.lane.b32.xlu0 %v370, 32
  %v373 = vpop.permute.xlu0 %372
  %375 = vst.msk [vmem:[#allocation3] sm:$0xff] %vm272, %v373
  %s376 = scalar_lea.vmem [#allocation2], 8
  %v377 = vld [vmem:[%s376] sm:$0xff]
  %v378 = vadd.f32 %v377, %v263
  %v379 = vsel %vm272, %v373, 0
  %381 = vmatprep.subr.mxu0 0.0
  %382 = vmatpush1.msra.mxu0 0.0
  %383 = vmatprep.subr.mxu0 0.0
  %384 = vmatpush1.msra.mxu0 0.0
  %385 = vmatprep.subr.mxu0 0.0
  %386 = vmatpush1.msra.mxu0 0.0
  %387 = vmatprep.subr.mxu0 0.0
  %388 = vmatpush1.msra.mxu0 0.0
  %389 = vmatprep.subr.mxu0 0.0
  %390 = vmatpush1.msra.mxu0 0.0
  %391 = vmatprep.subr.mxu0 0.0
  %392 = vmatpush1.msra.mxu0 0.0
  %393 = vmatprep.subr.mxu0 0.0
  %394 = vmatpush1.msra.mxu0 0.0
  %395 = vmatprep.subr.mxu0 0.0
  %396 = vmatpush1.msra.mxu0 0.0
  %397 = vmatprep.subr.mxu0 0.0
  %398 = vmatpush1.msra.mxu0 0.0
  %399 = vmatprep.subr.mxu0 0.0
  %400 = vmatpush1.msra.mxu0 0.0
  %401 = vmatprep.subr.mxu0 0.0
  %402 = vmatpush1.msra.mxu0 0.0
  %403 = vmatprep.subr.mxu0 0.0
  %404 = vmatpush1.msra.mxu0 0.0
  %405 = vmatprep.subr.mxu0 0.0
  %406 = vmatpush1.msra.mxu0 %v269
  %407 = vmatprep.subr.mxu0 0.0
  %408 = vmatpush1.msra.mxu0 %v268
  %409 = vmatprep.subr.mxu0 0.0
  %410 = vmatpush1.msra.mxu0 %v267
  %411 = vmatprep.subr.mxu0 0.0
  %412 = vmatpush1.msra.mxu0 %v266
  %413 = vmatprep.subr.mxu0 0.0
  %414 = vmatpush2.msra.mxu0 0.0
  %415 = vmatprep.subr.mxu0 0.0
  %416 = vmatpush2.msra.mxu0 0.0
  %417 = vmatprep.subr.mxu0 0.0
  %418 = vmatpush2.msra.mxu0 0.0
  %419 = vmatprep.subr.mxu0 0.0
  %420 = vmatpush2.msra.mxu0 0.0
  %421 = vmatprep.subr.mxu0 0.0
  %422 = vmatpush2.msra.mxu0 0.0
  %423 = vmatprep.subr.mxu0 0.0
  %424 = vmatpush2.msra.mxu0 0.0
  %425 = vmatprep.subr.mxu0 0.0
  %426 = vmatpush2.msra.mxu0 0.0
  %427 = vmatprep.subr.mxu0 0.0
  %428 = vmatpush2.msra.mxu0 0.0
  %429 = vmatprep.subr.mxu0 0.0
  %430 = vmatpush2.msra.mxu0 0.0
  %431 = vmatprep.subr.mxu0 0.0
  %432 = vmatpush2.msra.mxu0 0.0
  %433 = vmatprep.subr.mxu0 0.0
  %434 = vmatpush2.msra.mxu0 0.0
  %435 = vmatprep.subr.mxu0 0.0
  %436 = vmatpush2.msra.mxu0 0.0
  %437 = vmatprep.subr.mxu0 0.0
  %438 = vmatpush2.msra.mxu0 0.0
  %439 = vmatprep.subr.mxu0 0.0
  %440 = vmatpush2.msra.mxu0 0.0
  %441 = vmatprep.subr.mxu0 0.0
  %442 = vmatpush2.msra.mxu0 0.0
  %443 = vmatprep.subr.mxu0 0.0
  %444 = vmatpush2.msra.mxu0 0.0
  %445 = vmatprep.mubr.f32.mxu0 0.0
  %446 = vmatmul.mubr.f32.gmra.mxu0 %v379
  %v447 = vpop.f32.mrf.mxu0
  %v448 = vadd.f32 0.0, %v447
  %v449 = vpop.f32.mrf.mxu0
  %450 = vdwg.mxu0
  %v451 = vadd.f32 %v378, %v448
  %v452 = vxor.u32 %v451, 2147483648
  %v453 = vmul.f32 %v452, 1.442695
  %v454 = vpow.pop %v453
  %v455 = vadd.f32 %v454, 1.0
  %v456 = vrcp.pop %v455
  %v457 = vmul.f32 1.0, %v456
  %v458 = vtanh.pop %v451
  %v459 = vmul.f32 %v457, %v364
  %461 = vrot.lane.b32.xlu0 %v458, 64
  %v462 = vpop.permute.xlu0 %461
  %v464 = vmul.f32 %v457, %v462
  %466 = vrot.lane.b32.xlu0 %v464, 32
  %v467 = vpop.permute.xlu0 %466
  %v469 = vadd.f32 %v459, %v467
  %v470 = vtanh.pop %v469
  %472 = vrot.lane.b32.xlu0 %v470, 64
  %v473 = vpop.permute.xlu0 %472
  %v475 = vmul.f32 %v457, %v473
  %477 = vrot.lane.b32.xlu0 %v475, 32
  %v478 = vpop.permute.xlu0 %477
  %s480 = scalar_lea.vmem [#allocation3], 8
  %481 = vst.msk [vmem:[%s480] sm:$0xff] %vm272, %v478
  %s482 = scalar_lea.vmem [#allocation2], 16
  %v483 = vld [vmem:[%s482] sm:$0xff]
  %v484 = vadd.f32 %v483, %v263
  %v485 = vsel %vm272, %v478, 0
  %487 = vmatprep.subr.mxu0 0.0
  %488 = vmatpush1.msra.mxu0 0.0
  %489 = vmatprep.subr.mxu0 0.0
  %490 = vmatpush1.msra.mxu0 0.0
  %491 = vmatprep.subr.mxu0 0.0
  %492 = vmatpush1.msra.mxu0 0.0
  %493 = vmatprep.subr.mxu0 0.0
  %494 = vmatpush1.msra.mxu0 0.0
  %495 = vmatprep.subr.mxu0 0.0
  %496 = vmatpush1.msra.mxu0 0.0
  %497 = vmatprep.subr.mxu0 0.0
  %498 = vmatpush1.msra.mxu0 0.0
  %499 = vmatprep.subr.mxu0 0.0
  %500 = vmatpush1.msra.mxu0 0.0
  %501 = vmatprep.subr.mxu0 0.0
  %502 = vmatpush1.msra.mxu0 0.0
  %503 = vmatprep.subr.mxu0 0.0
  %504 = vmatpush1.msra.mxu0 0.0
  %505 = vmatprep.subr.mxu0 0.0
  %506 = vmatpush1.msra.mxu0 0.0
  %507 = vmatprep.subr.mxu0 0.0
  %508 = vmatpush1.msra.mxu0 0.0
  %509 = vmatprep.subr.mxu0 0.0
  %510 = vmatpush1.msra.mxu0 0.0
  %511 = vmatprep.subr.mxu0 0.0
  %512 = vmatpush1.msra.mxu0 %v269
  %513 = vmatprep.subr.mxu0 0.0
  %514 = vmatpush1.msra.mxu0 %v268
  %515 = vmatprep.subr.mxu0 0.0
  %516 = vmatpush1.msra.mxu0 %v267
  %517 = vmatprep.subr.mxu0 0.0
  %518 = vmatpush1.msra.mxu0 %v266
  %519 = vmatprep.subr.mxu0 0.0
  %520 = vmatpush2.msra.mxu0 0.0
  %521 = vmatprep.subr.mxu0 0.0
  %522 = vmatpush2.msra.mxu0 0.0
  %523 = vmatprep.subr.mxu0 0.0
  %524 = vmatpush2.msra.mxu0 0.0
  %525 = vmatprep.subr.mxu0 0.0
  %526 = vmatpush2.msra.mxu0 0.0
  %527 = vmatprep.subr.mxu0 0.0
  %528 = vmatpush2.msra.mxu0 0.0
  %529 = vmatprep.subr.mxu0 0.0
  %530 = vmatpush2.msra.mxu0 0.0
  %531 = vmatprep.subr.mxu0 0.0
  %532 = vmatpush2.msra.mxu0 0.0
  %533 = vmatprep.subr.mxu0 0.0
  %534 = vmatpush2.msra.mxu0 0.0
  %535 = vmatprep.subr.mxu0 0.0
  %536 = vmatpush2.msra.mxu0 0.0
  %537 = vmatprep.subr.mxu0 0.0
  %538 = vmatpush2.msra.mxu0 0.0
  %539 = vmatprep.subr.mxu0 0.0
  %540 = vmatpush2.msra.mxu0 0.0
  %541 = vmatprep.subr.mxu0 0.0
  %542 = vmatpush2.msra.mxu0 0.0
  %543 = vmatprep.subr.mxu0 0.0
  %544 = vmatpush2.msra.mxu0 0.0
  %545 = vmatprep.subr.mxu0 0.0
  %546 = vmatpush2.msra.mxu0 0.0
  %547 = vmatprep.subr.mxu0 0.0
  %548 = vmatpush2.msra.mxu0 0.0
  %549 = vmatprep.subr.mxu0 0.0
  %550 = vmatpush2.msra.mxu0 0.0
  %551 = vmatprep.mubr.f32.mxu0 0.0
  %552 = vmatmul.mubr.f32.gmra.mxu0 %v485
  %v553 = vpop.f32.mrf.mxu0
  %v554 = vadd.f32 0.0, %v553
  %v555 = vpop.f32.mrf.mxu0
  %556 = vdwg.mxu0
  %v557 = vadd.f32 %v484, %v554
  %v558 = vxor.u32 %v557, 2147483648
  %v559 = vmul.f32 %v558, 1.442695
  %v560 = vpow.pop %v559
  %v561 = vadd.f32 %v560, 1.0
  %v562 = vrcp.pop %v561
  %v563 = vmul.f32 1.0, %v562
  %v564 = vtanh.pop %v557
  %v565 = vmul.f32 %v563, %v469
  %567 = vrot.lane.b32.xlu0 %v564, 64
  %v568 = vpop.permute.xlu0 %567
  %v570 = vmul.f32 %v563, %v568
  %572 = vrot.lane.b32.xlu0 %v570, 32
  %v573 = vpop.permute.xlu0 %572
  %v575 = vadd.f32 %v565, %v573
  %v576 = vtanh.pop %v575
  %578 = vrot.lane.b32.xlu0 %v576, 64
  %v579 = vpop.permute.xlu0 %578
  %v581 = vmul.f32 %v563, %v579
  %583 = vrot.lane.b32.xlu0 %v581, 32
  %v584 = vpop.permute.xlu0 %583
  %s586 = scalar_lea.vmem [#allocation3], 16
  %587 = vst.msk [vmem:[%s586] sm:$0xff] %vm272, %v584
  %s588 = scalar_lea.vmem [#allocation2], 24
  %v589 = vld [vmem:[%s588] sm:$0xff]
  %v590 = vadd.f32 %v589, %v263
  %v591 = vsel %vm272, %v584, 0
  %593 = vmatprep.subr.mxu0 0.0
  %594 = vmatpush1.msra.mxu0 0.0
  %595 = vmatprep.subr.mxu0 0.0
  %596 = vmatpush1.msra.mxu0 0.0
  %597 = vmatprep.subr.mxu0 0.0
  %598 = vmatpush1.msra.mxu0 0.0
  %599 = vmatprep.subr.mxu0 0.0
  %600 = vmatpush1.msra.mxu0 0.0
  %601 = vmatprep.subr.mxu0 0.0
  %602 = vmatpush1.msra.mxu0 0.0
  %603 = vmatprep.subr.mxu0 0.0
  %604 = vmatpush1.msra.mxu0 0.0
  %605 = vmatprep.subr.mxu0 0.0
  %606 = vmatpush1.msra.mxu0 0.0
  %607 = vmatprep.subr.mxu0 0.0
  %608 = vmatpush1.msra.mxu0 0.0
  %609 = vmatprep.subr.mxu0 0.0
  %610 = vmatpush1.msra.mxu0 0.0
  %611 = vmatprep.subr.mxu0 0.0
  %612 = vmatpush1.msra.mxu0 0.0
  %613 = vmatprep.subr.mxu0 0.0
  %614 = vmatpush1.msra.mxu0 0.0
  %615 = vmatprep.subr.mxu0 0.0
  %616 = vmatpush1.msra.mxu0 0.0
  %617 = vmatprep.subr.mxu0 0.0
  %618 = vmatpush1.msra.mxu0 %v269
  %619 = vmatprep.subr.mxu0 0.0
  %620 = vmatpush1.msra.mxu0 %v268
  %621 = vmatprep.subr.mxu0 0.0
  %622 = vmatpush1.msra.mxu0 %v267
  %623 = vmatprep.subr.mxu0 0.0
  %624 = vmatpush1.msra.mxu0 %v266
  %625 = vmatprep.subr.mxu0 0.0
  %626 = vmatpush2.msra.mxu0 0.0
  %627 = vmatprep.subr.mxu0 0.0
  %628 = vmatpush2.msra.mxu0 0.0
  %629 = vmatprep.subr.mxu0 0.0
  %630 = vmatpush2.msra.mxu0 0.0
  %631 = vmatprep.subr.mxu0 0.0
  %632 = vmatpush2.msra.mxu0 0.0
  %633 = vmatprep.subr.mxu0 0.0
  %634 = vmatpush2.msra.mxu0 0.0
  %635 = vmatprep.subr.mxu0 0.0
  %636 = vmatpush2.msra.mxu0 0.0
  %637 = vmatprep.subr.mxu0 0.0
  %638 = vmatpush2.msra.mxu0 0.0
  %639 = vmatprep.subr.mxu0 0.0
  %640 = vmatpush2.msra.mxu0 0.0
  %641 = vmatprep.subr.mxu0 0.0
  %642 = vmatpush2.msra.mxu0 0.0
  %643 = vmatprep.subr.mxu0 0.0
  %644 = vmatpush2.msra.mxu0 0.0
  %645 = vmatprep.subr.mxu0 0.0
  %646 = vmatpush2.msra.mxu0 0.0
  %647 = vmatprep.subr.mxu0 0.0
  %648 = vmatpush2.msra.mxu0 0.0
  %649 = vmatprep.subr.mxu0 0.0
  %650 = vmatpush2.msra.mxu0 0.0
  %651 = vmatprep.subr.mxu0 0.0
  %652 = vmatpush2.msra.mxu0 0.0
  %653 = vmatprep.subr.mxu0 0.0
  %654 = vmatpush2.msra.mxu0 0.0
  %655 = vmatprep.subr.mxu0 0.0
  %656 = vmatpush2.msra.mxu0 0.0
  %657 = vmatprep.mubr.f32.mxu0 0.0
  %658 = vmatmul.mubr.f32.gmra.mxu0 %v591
  %v659 = vpop.f32.mrf.mxu0
  %v660 = vadd.f32 0.0, %v659
  %v661 = vpop.f32.mrf.mxu0
  %662 = vdwg.mxu0
  %v663 = vadd.f32 %v590, %v660
  %v664 = vxor.u32 %v663, 2147483648
  %v665 = vmul.f32 %v664, 1.442695
  %v666 = vpow.pop %v665
  %v667 = vadd.f32 %v666, 1.0
  %v668 = vrcp.pop %v667
  %v669 = vmul.f32 1.0, %v668
  %v670 = vtanh.pop %v663
  %v671 = vmul.f32 %v669, %v575
  %673 = vrot.lane.b32.xlu0 %v670, 64
  %v674 = vpop.permute.xlu0 %673
  %v676 = vmul.f32 %v669, %v674
  %678 = vrot.lane.b32.xlu0 %v676, 32
  %v679 = vpop.permute.xlu0 %678
  %v681 = vadd.f32 %v671, %v679
  %v682 = vtanh.pop %v681
  %684 = vrot.lane.b32.xlu0 %v682, 64
  %v685 = vpop.permute.xlu0 %684
  %v687 = vmul.f32 %v669, %v685
  %689 = vrot.lane.b32.xlu0 %v687, 32
  %v690 = vpop.permute.xlu0 %689
  %s692 = scalar_lea.vmem [#allocation3], 24
  %693 = vst.msk [vmem:[%s692] sm:$0xff] %vm272, %v690
  %s694 = scalar_lea.vmem [#allocation2], 32
  %v695 = vld [vmem:[%s694] sm:$0xff]
  %v696 = vadd.f32 %v695, %v263
  %v697 = vsel %vm272, %v690, 0
  %699 = vmatprep.subr.mxu0 0.0
  %700 = vmatpush1.msra.mxu0 0.0
  %701 = vmatprep.subr.mxu0 0.0
  %702 = vmatpush1.msra.mxu0 0.0
  %703 = vmatprep.subr.mxu0 0.0
  %704 = vmatpush1.msra.mxu0 0.0
  %705 = vmatprep.subr.mxu0 0.0
  %706 = vmatpush1.msra.mxu0 0.0
  %707 = vmatprep.subr.mxu0 0.0
  %708 = vmatpush1.msra.mxu0 0.0
  %709 = vmatprep.subr.mxu0 0.0
  %710 = vmatpush1.msra.mxu0 0.0
  %711 = vmatprep.subr.mxu0 0.0
  %712 = vmatpush1.msra.mxu0 0.0
  %713 = vmatprep.subr.mxu0 0.0
  %714 = vmatpush1.msra.mxu0 0.0
  %715 = vmatprep.subr.mxu0 0.0
  %716 = vmatpush1.msra.mxu0 0.0
  %717 = vmatprep.subr.mxu0 0.0
  %718 = vmatpush1.msra.mxu0 0.0
  %719 = vmatprep.subr.mxu0 0.0
  %720 = vmatpush1.msra.mxu0 0.0
  %721 = vmatprep.subr.mxu0 0.0
  %722 = vmatpush1.msra.mxu0 0.0
  %723 = vmatprep.subr.mxu0 0.0
  %724 = vmatpush1.msra.mxu0 %v269
  %725 = vmatprep.subr.mxu0 0.0
  %726 = vmatpush1.msra.mxu0 %v268
  %727 = vmatprep.subr.mxu0 0.0
  %728 = vmatpush1.msra.mxu0 %v267
  %729 = vmatprep.subr.mxu0 0.0
  %730 = vmatpush1.msra.mxu0 %v266
  %731 = vmatprep.subr.mxu0 0.0
  %732 = vmatpush2.msra.mxu0 0.0
  %733 = vmatprep.subr.mxu0 0.0
  %734 = vmatpush2.msra.mxu0 0.0
  %735 = vmatprep.subr.mxu0 0.0
  %736 = vmatpush2.msra.mxu0 0.0
  %737 = vmatprep.subr.mxu0 0.0
  %738 = vmatpush2.msra.mxu0 0.0
  %739 = vmatprep.subr.mxu0 0.0
  %740 = vmatpush2.msra.mxu0 0.0
  %741 = vmatprep.subr.mxu0 0.0
  %742 = vmatpush2.msra.mxu0 0.0
  %743 = vmatprep.subr.mxu0 0.0
  %744 = vmatpush2.msra.mxu0 0.0
  %745 = vmatprep.subr.mxu0 0.0
  %746 = vmatpush2.msra.mxu0 0.0
  %747 = vmatprep.subr.mxu0 0.0
  %748 = vmatpush2.msra.mxu0 0.0
  %749 = vmatprep.subr.mxu0 0.0
  %750 = vmatpush2.msra.mxu0 0.0
  %751 = vmatprep.subr.mxu0 0.0
  %752 = vmatpush2.msra.mxu0 0.0
  %753 = vmatprep.subr.mxu0 0.0
  %754 = vmatpush2.msra.mxu0 0.0
  %755 = vmatprep.subr.mxu0 0.0
  %756 = vmatpush2.msra.mxu0 0.0
  %757 = vmatprep.subr.mxu0 0.0
  %758 = vmatpush2.msra.mxu0 0.0
  %759 = vmatprep.subr.mxu0 0.0
  %760 = vmatpush2.msra.mxu0 0.0
  %761 = vmatprep.subr.mxu0 0.0
  %762 = vmatpush2.msra.mxu0 0.0
  %763 = vmatprep.mubr.f32.mxu0 0.0
  %764 = vmatmul.mubr.f32.gmra.mxu0 %v697
  %v765 = vpop.f32.mrf.mxu0
  %v766 = vadd.f32 0.0, %v765
  %v767 = vpop.f32.mrf.mxu0
  %768 = vdwg.mxu0
  %v769 = vadd.f32 %v696, %v766
  %v770 = vxor.u32 %v769, 2147483648
  %v771 = vmul.f32 %v770, 1.442695
  %v772 = vpow.pop %v771
  %v773 = vadd.f32 %v772, 1.0
  %v774 = vrcp.pop %v773
  %v775 = vmul.f32 1.0, %v774
  %v776 = vtanh.pop %v769
  %v777 = vmul.f32 %v775, %v681
  %779 = vrot.lane.b32.xlu0 %v776, 64
  %v780 = vpop.permute.xlu0 %779
  %v782 = vmul.f32 %v775, %v780
  %784 = vrot.lane.b32.xlu0 %v782, 32
  %v785 = vpop.permute.xlu0 %784
  %v787 = vadd.f32 %v777, %v785
  %v788 = vtanh.pop %v787
  %790 = vrot.lane.b32.xlu0 %v788, 64
  %v791 = vpop.permute.xlu0 %790
  %v793 = vmul.f32 %v775, %v791
  %795 = vrot.lane.b32.xlu0 %v793, 32
  %v796 = vpop.permute.xlu0 %795
  %s798 = scalar_lea.vmem [#allocation3], 32
  %799 = vst.msk [vmem:[%s798] sm:$0xff] %vm272, %v796
  %s800 = scalar_lea.vmem [#allocation2], 40
  %v801 = vld [vmem:[%s800] sm:$0xff]
  %v802 = vadd.f32 %v801, %v263
  %v803 = vsel %vm272, %v796, 0
  %805 = vmatprep.subr.mxu0 0.0
  %806 = vmatpush1.msra.mxu0 0.0
  %807 = vmatprep.subr.mxu0 0.0
  %808 = vmatpush1.msra.mxu0 0.0
  %809 = vmatprep.subr.mxu0 0.0
  %810 = vmatpush1.msra.mxu0 0.0
  %811 = vmatprep.subr.mxu0 0.0
  %812 = vmatpush1.msra.mxu0 0.0
  %813 = vmatprep.subr.mxu0 0.0
  %814 = vmatpush1.msra.mxu0 0.0
  %815 = vmatprep.subr.mxu0 0.0
  %816 = vmatpush1.msra.mxu0 0.0
  %817 = vmatprep.subr.mxu0 0.0
  %818 = vmatpush1.msra.mxu0 0.0
  %819 = vmatprep.subr.mxu0 0.0
  %820 = vmatpush1.msra.mxu0 0.0
  %821 = vmatprep.subr.mxu0 0.0
  %822 = vmatpush1.msra.mxu0 0.0
  %823 = vmatprep.subr.mxu0 0.0
  %824 = vmatpush1.msra.mxu0 0.0
  %825 = vmatprep.subr.mxu0 0.0
  %826 = vmatpush1.msra.mxu0 0.0
  %827 = vmatprep.subr.mxu0 0.0
  %828 = vmatpush1.msra.mxu0 0.0
  %829 = vmatprep.subr.mxu0 0.0
  %830 = vmatpush1.msra.mxu0 %v269
  %831 = vmatprep.subr.mxu0 0.0
  %832 = vmatpush1.msra.mxu0 %v268
  %833 = vmatprep.subr.mxu0 0.0
  %834 = vmatpush1.msra.mxu0 %v267
  %835 = vmatprep.subr.mxu0 0.0
  %836 = vmatpush1.msra.mxu0 %v266
  %837 = vmatprep.subr.mxu0 0.0
  %838 = vmatpush2.msra.mxu0 0.0
  %839 = vmatprep.subr.mxu0 0.0
  %840 = vmatpush2.msra.mxu0 0.0
  %841 = vmatprep.subr.mxu0 0.0
  %842 = vmatpush2.msra.mxu0 0.0
  %843 = vmatprep.subr.mxu0 0.0
  %844 = vmatpush2.msra.mxu0 0.0
  %845 = vmatprep.subr.mxu0 0.0
  %846 = vmatpush2.msra.mxu0 0.0
  %847 = vmatprep.subr.mxu0 0.0
  %848 = vmatpush2.msra.mxu0 0.0
  %849 = vmatprep.subr.mxu0 0.0
  %850 = vmatpush2.msra.mxu0 0.0
  %851 = vmatprep.subr.mxu0 0.0
  %852 = vmatpush2.msra.mxu0 0.0
  %853 = vmatprep.subr.mxu0 0.0
  %854 = vmatpush2.msra.mxu0 0.0
  %855 = vmatprep.subr.mxu0 0.0
  %856 = vmatpush2.msra.mxu0 0.0
  %857 = vmatprep.subr.mxu0 0.0
  %858 = vmatpush2.msra.mxu0 0.0
  %859 = vmatprep.subr.mxu0 0.0
  %860 = vmatpush2.msra.mxu0 0.0
  %861 = vmatprep.subr.mxu0 0.0
  %862 = vmatpush2.msra.mxu0 0.0
  %863 = vmatprep.subr.mxu0 0.0
  %864 = vmatpush2.msra.mxu0 0.0
  %865 = vmatprep.subr.mxu0 0.0
  %866 = vmatpush2.msra.mxu0 0.0
  %867 = vmatprep.subr.mxu0 0.0
  %868 = vmatpush2.msra.mxu0 0.0
  %869 = vmatprep.mubr.f32.mxu0 0.0
  %870 = vmatmul.mubr.f32.gmra.mxu0 %v803
  %v871 = vpop.f32.mrf.mxu0
  %v872 = vadd.f32 0.0, %v871
  %v873 = vpop.f32.mrf.mxu0
  %874 = vdwg.mxu0
  %v875 = vadd.f32 %v802, %v872
  %v876 = vxor.u32 %v875, 2147483648
  %v877 = vmul.f32 %v876, 1.442695
  %v878 = vpow.pop %v877
  %v879 = vadd.f32 %v878, 1.0
  %v880 = vrcp.pop %v879
  %v881 = vmul.f32 1.0, %v880
  %v882 = vtanh.pop %v875
  %v883 = vmul.f32 %v881, %v787
  %885 = vrot.lane.b32.xlu0 %v882, 64
  %v886 = vpop.permute.xlu0 %885
  %v888 = vmul.f32 %v881, %v886
  %890 = vrot.lane.b32.xlu0 %v888, 32
  %v891 = vpop.permute.xlu0 %890
  %v893 = vadd.f32 %v883, %v891
  %v894 = vtanh.pop %v893
  %896 = vrot.lane.b32.xlu0 %v894, 64
  %v897 = vpop.permute.xlu0 %896
  %v899 = vmul.f32 %v881, %v897
  %901 = vrot.lane.b32.xlu0 %v899, 32
  %v902 = vpop.permute.xlu0 %901
  %s904 = scalar_lea.vmem [#allocation3], 40
  %905 = vst.msk [vmem:[%s904] sm:$0xff] %vm272, %v902
  %s906 = scalar_lea.vmem [#allocation2], 48
  %v907 = vld [vmem:[%s906] sm:$0xff]
  %v908 = vadd.f32 %v907, %v263
  %v909 = vsel %vm272, %v902, 0
  %911 = vmatprep.subr.mxu0 0.0
  %912 = vmatpush1.msra.mxu0 0.0
  %913 = vmatprep.subr.mxu0 0.0
  %914 = vmatpush1.msra.mxu0 0.0
  %915 = vmatprep.subr.mxu0 0.0
  %916 = vmatpush1.msra.mxu0 0.0
  %917 = vmatprep.subr.mxu0 0.0
  %918 = vmatpush1.msra.mxu0 0.0
  %919 = vmatprep.subr.mxu0 0.0
  %920 = vmatpush1.msra.mxu0 0.0
  %921 = vmatprep.subr.mxu0 0.0
  %922 = vmatpush1.msra.mxu0 0.0
  %923 = vmatprep.subr.mxu0 0.0
  %924 = vmatpush1.msra.mxu0 0.0
  %925 = vmatprep.subr.mxu0 0.0
  %926 = vmatpush1.msra.mxu0 0.0
  %927 = vmatprep.subr.mxu0 0.0
  %928 = vmatpush1.msra.mxu0 0.0
  %929 = vmatprep.subr.mxu0 0.0
  %930 = vmatpush1.msra.mxu0 0.0
  %931 = vmatprep.subr.mxu0 0.0
  %932 = vmatpush1.msra.mxu0 0.0
  %933 = vmatprep.subr.mxu0 0.0
  %934 = vmatpush1.msra.mxu0 0.0
  %935 = vmatprep.subr.mxu0 0.0
  %936 = vmatpush1.msra.mxu0 %v269
  %937 = vmatprep.subr.mxu0 0.0
  %938 = vmatpush1.msra.mxu0 %v268
  %939 = vmatprep.subr.mxu0 0.0
  %940 = vmatpush1.msra.mxu0 %v267
  %941 = vmatprep.subr.mxu0 0.0
  %942 = vmatpush1.msra.mxu0 %v266
  %943 = vmatprep.subr.mxu0 0.0
  %944 = vmatpush2.msra.mxu0 0.0
  %945 = vmatprep.subr.mxu0 0.0
  %946 = vmatpush2.msra.mxu0 0.0
  %947 = vmatprep.subr.mxu0 0.0
  %948 = vmatpush2.msra.mxu0 0.0
  %949 = vmatprep.subr.mxu0 0.0
  %950 = vmatpush2.msra.mxu0 0.0
  %951 = vmatprep.subr.mxu0 0.0
  %952 = vmatpush2.msra.mxu0 0.0
  %953 = vmatprep.subr.mxu0 0.0
  %954 = vmatpush2.msra.mxu0 0.0
  %955 = vmatprep.subr.mxu0 0.0
  %956 = vmatpush2.msra.mxu0 0.0
  %957 = vmatprep.subr.mxu0 0.0
  %958 = vmatpush2.msra.mxu0 0.0
  %959 = vmatprep.subr.mxu0 0.0
  %960 = vmatpush2.msra.mxu0 0.0
  %961 = vmatprep.subr.mxu0 0.0
  %962 = vmatpush2.msra.mxu0 0.0
  %963 = vmatprep.subr.mxu0 0.0
  %964 = vmatpush2.msra.mxu0 0.0
  %965 = vmatprep.subr.mxu0 0.0
  %966 = vmatpush2.msra.mxu0 0.0
  %967 = vmatprep.subr.mxu0 0.0
  %968 = vmatpush2.msra.mxu0 0.0
  %969 = vmatprep.subr.mxu0 0.0
  %970 = vmatpush2.msra.mxu0 0.0
  %971 = vmatprep.subr.mxu0 0.0
  %972 = vmatpush2.msra.mxu0 0.0
  %973 = vmatprep.subr.mxu0 0.0
  %974 = vmatpush2.msra.mxu0 0.0
  %975 = vmatprep.mubr.f32.mxu0 0.0
  %976 = vmatmul.mubr.f32.gmra.mxu0 %v909
  %v977 = vpop.f32.mrf.mxu0
  %v978 = vadd.f32 0.0, %v977
  %v979 = vpop.f32.mrf.mxu0
  %980 = vdwg.mxu0
  %v981 = vadd.f32 %v908, %v978
  %v982 = vxor.u32 %v981, 2147483648
  %v983 = vmul.f32 %v982, 1.442695
  %v984 = vpow.pop %v983
  %v985 = vadd.f32 %v984, 1.0
  %v986 = vrcp.pop %v985
  %v987 = vmul.f32 1.0, %v986
  %v988 = vtanh.pop %v981
  %v989 = vmul.f32 %v987, %v893
  %991 = vrot.lane.b32.xlu0 %v988, 64
  %v992 = vpop.permute.xlu0 %991
  %v994 = vmul.f32 %v987, %v992
  %996 = vrot.lane.b32.xlu0 %v994, 32
  %v997 = vpop.permute.xlu0 %996
  %v999 = vadd.f32 %v989, %v997
  %v1000 = vtanh.pop %v999
  %1002 = vrot.lane.b32.xlu0 %v1000, 64
  %v1003 = vpop.permute.xlu0 %1002
  %v1005 = vmul.f32 %v987, %v1003
  %1007 = vrot.lane.b32.xlu0 %v1005, 32
  %v1008 = vpop.permute.xlu0 %1007
  %s1010 = scalar_lea.vmem [#allocation3], 48
  %1011 = vst.msk [vmem:[%s1010] sm:$0xff] %vm272, %v1008
  %s1012 = scalar_lea.vmem [#allocation2], 56
  %v1013 = vld [vmem:[%s1012] sm:$0xff]
  %v1014 = vadd.f32 %v1013, %v263
  %v1015 = vsel %vm272, %v1008, 0
  %1017 = vmatprep.subr.mxu0 0.0
  %1018 = vmatpush1.msra.mxu0 0.0
  %1019 = vmatprep.subr.mxu0 0.0
  %1020 = vmatpush1.msra.mxu0 0.0
  %1021 = vmatprep.subr.mxu0 0.0
  %1022 = vmatpush1.msra.mxu0 0.0
  %1023 = vmatprep.subr.mxu0 0.0
  %1024 = vmatpush1.msra.mxu0 0.0
  %1025 = vmatprep.subr.mxu0 0.0
  %1026 = vmatpush1.msra.mxu0 0.0
  %1027 = vmatprep.subr.mxu0 0.0
  %1028 = vmatpush1.msra.mxu0 0.0
  %1029 = vmatprep.subr.mxu0 0.0
  %1030 = vmatpush1.msra.mxu0 0.0
  %1031 = vmatprep.subr.mxu0 0.0
  %1032 = vmatpush1.msra.mxu0 0.0
  %1033 = vmatprep.subr.mxu0 0.0
  %1034 = vmatpush1.msra.mxu0 0.0
  %1035 = vmatprep.subr.mxu0 0.0
  %1036 = vmatpush1.msra.mxu0 0.0
  %1037 = vmatprep.subr.mxu0 0.0
  %1038 = vmatpush1.msra.mxu0 0.0
  %1039 = vmatprep.subr.mxu0 0.0
  %1040 = vmatpush1.msra.mxu0 0.0
  %1041 = vmatprep.subr.mxu0 0.0
  %1042 = vmatpush1.msra.mxu0 %v269
  %1043 = vmatprep.subr.mxu0 0.0
  %1044 = vmatpush1.msra.mxu0 %v268
  %1045 = vmatprep.subr.mxu0 0.0
  %1046 = vmatpush1.msra.mxu0 %v267
  %1047 = vmatprep.subr.mxu0 0.0
  %1048 = vmatpush1.msra.mxu0 %v266
  %1049 = vmatprep.subr.mxu0 0.0
  %1050 = vmatpush2.msra.mxu0 0.0
  %1051 = vmatprep.subr.mxu0 0.0
  %1052 = vmatpush2.msra.mxu0 0.0
  %1053 = vmatprep.subr.mxu0 0.0
  %1054 = vmatpush2.msra.mxu0 0.0
  %1055 = vmatprep.subr.mxu0 0.0
  %1056 = vmatpush2.msra.mxu0 0.0
  %1057 = vmatprep.subr.mxu0 0.0
  %1058 = vmatpush2.msra.mxu0 0.0
  %1059 = vmatprep.subr.mxu0 0.0
  %1060 = vmatpush2.msra.mxu0 0.0
  %1061 = vmatprep.subr.mxu0 0.0
  %1062 = vmatpush2.msra.mxu0 0.0
  %1063 = vmatprep.subr.mxu0 0.0
  %1064 = vmatpush2.msra.mxu0 0.0
  %1065 = vmatprep.subr.mxu0 0.0
  %1066 = vmatpush2.msra.mxu0 0.0
  %1067 = vmatprep.subr.mxu0 0.0
  %1068 = vmatpush2.msra.mxu0 0.0
  %1069 = vmatprep.subr.mxu0 0.0
  %1070 = vmatpush2.msra.mxu0 0.0
  %1071 = vmatprep.subr.mxu0 0.0
  %1072 = vmatpush2.msra.mxu0 0.0
  %1073 = vmatprep.subr.mxu0 0.0
  %1074 = vmatpush2.msra.mxu0 0.0
  %1075 = vmatprep.subr.mxu0 0.0
  %1076 = vmatpush2.msra.mxu0 0.0
  %1077 = vmatprep.subr.mxu0 0.0
  %1078 = vmatpush2.msra.mxu0 0.0
  %1079 = vmatprep.subr.mxu0 0.0
  %1080 = vmatpush2.msra.mxu0 0.0
  %1081 = vmatprep.mubr.f32.mxu0 0.0
  %1082 = vmatmul.mubr.f32.gmra.mxu0 %v1015
  %v1083 = vpop.f32.mrf.mxu0
  %v1084 = vadd.f32 0.0, %v1083
  %v1085 = vpop.f32.mrf.mxu0
  %1086 = vdwg.mxu0
  %v1087 = vadd.f32 %v1014, %v1084
  %v1088 = vxor.u32 %v1087, 2147483648
  %v1089 = vmul.f32 %v1088, 1.442695
  %v1090 = vpow.pop %v1089
  %v1091 = vadd.f32 %v1090, 1.0
  %v1092 = vrcp.pop %v1091
  %v1093 = vmul.f32 1.0, %v1092
  %v1094 = vtanh.pop %v1087
  %v1095 = vmul.f32 %v1093, %v999
  %1097 = vrot.lane.b32.xlu0 %v1094, 64
  %v1098 = vpop.permute.xlu0 %1097
  %v1100 = vmul.f32 %v1093, %v1098
  %1102 = vrot.lane.b32.xlu0 %v1100, 32
  %v1103 = vpop.permute.xlu0 %1102
  %v1105 = vadd.f32 %v1095, %v1103
  %v1106 = vtanh.pop %v1105
  %1108 = vrot.lane.b32.xlu0 %v1106, 64
  %v1109 = vpop.permute.xlu0 %1108
  %v1111 = vmul.f32 %v1093, %v1109
  %1113 = vrot.lane.b32.xlu0 %v1111, 32
  %v1114 = vpop.permute.xlu0 %1113
  %s1116 = scalar_lea.vmem [#allocation3], 56
  %1117 = vst.msk [vmem:[%s1116] sm:$0xff] %vm272, %v1114
  %v1118 = vld [vmem:[#allocation3] sm:$0xff]
  %v1119 = vld [vmem:[#allocation3 + $0x8] sm:$0xff]
  %v1120 = vld [vmem:[#allocation3 + $0x10] sm:$0xff]
  %v1121 = vld [vmem:[#allocation3 + $0x18] sm:$0xff]
  %v1122 = vld [vmem:[#allocation3 + $0x20] sm:$0xff]
  %v1123 = vld [vmem:[#allocation3 + $0x28] sm:$0xff]
  %v1124 = vld [vmem:[#allocation3 + $0x30] sm:$0xff]
  %v1125 = vld [vmem:[#allocation3 + $0x38] sm:$0xff]
  %v1126 = vld [vmem:[%s6] sm:$0xff]
  %v1127 = vld [vmem:[%s6 + $0x8] sm:$0xff]
  %v1128 = vld [vmem:[%s6 + $0x10] sm:$0xff]
  %v1129 = vld [vmem:[%s6 + $0x18] sm:$0xff]
  %v1130 = vld [vmem:[%s7] sm:$0x1]
  %v1132 = vlaneseq
  %v1133 = vshrl.u32 %v1132, 7
  %v1134 = vsub.s32 0, %v1133
  %v1135 = vrot.slane %v1130, %v1134
  %v1138 = vsel %vm272, %v1118, 0
  %v1141 = vsel %vm272, %v1119, 0
  %v1144 = vsel %vm272, %v1120, 0
  %v1147 = vsel %vm272, %v1121, 0
  %v1150 = vsel %vm272, %v1122, 0
  %v1153 = vsel %vm272, %v1123, 0
  %v1156 = vsel %vm272, %v1124, 0
  %v1159 = vsel %vm272, %v1125, 0
  %1161 = vmatprep.subr.mxu0 0.0
  %1162 = vmatpush1.msra.mxu0 0.0
  %1163 = vmatprep.subr.mxu0 0.0
  %1164 = vmatpush1.msra.mxu0 0.0
  %1165 = vmatprep.subr.mxu0 0.0
  %1166 = vmatpush1.msra.mxu0 0.0
  %1167 = vmatprep.subr.mxu0 0.0
  %1168 = vmatpush1.msra.mxu0 0.0
  %1169 = vmatprep.subr.mxu0 0.0
  %1170 = vmatpush1.msra.mxu0 0.0
  %1171 = vmatprep.subr.mxu0 0.0
  %1172 = vmatpush1.msra.mxu0 0.0
  %1173 = vmatprep.subr.mxu0 0.0
  %1174 = vmatpush1.msra.mxu0 0.0
  %1175 = vmatprep.subr.mxu0 0.0
  %1176 = vmatpush1.msra.mxu0 0.0
  %1177 = vmatprep.subr.mxu0 0.0
  %1178 = vmatpush1.msra.mxu0 0.0
  %1179 = vmatprep.subr.mxu0 0.0
  %1180 = vmatpush1.msra.mxu0 0.0
  %1181 = vmatprep.subr.mxu0 0.0
  %1182 = vmatpush1.msra.mxu0 0.0
  %1183 = vmatprep.subr.mxu0 0.0
  %1184 = vmatpush1.msra.mxu0 0.0
  %1185 = vmatprep.subr.mxu0 0.0
  %1186 = vmatpush1.msra.mxu0 %v1129
  %1187 = vmatprep.subr.mxu0 0.0
  %1188 = vmatpush1.msra.mxu0 %v1128
  %1189 = vmatprep.subr.mxu0 0.0
  %1190 = vmatpush1.msra.mxu0 %v1127
  %1191 = vmatprep.subr.mxu0 0.0
  %1192 = vmatpush1.msra.mxu0 %v1126
  %1193 = vmatprep.subr.mxu0 0.0
  %1194 = vmatpush2.msra.mxu0 0.0
  %1195 = vmatprep.subr.mxu0 0.0
  %1196 = vmatpush2.msra.mxu0 0.0
  %1197 = vmatprep.subr.mxu0 0.0
  %1198 = vmatpush2.msra.mxu0 0.0
  %1199 = vmatprep.subr.mxu0 0.0
  %1200 = vmatpush2.msra.mxu0 0.0
  %1201 = vmatprep.subr.mxu0 0.0
  %1202 = vmatpush2.msra.mxu0 0.0
  %1203 = vmatprep.subr.mxu0 0.0
  %1204 = vmatpush2.msra.mxu0 0.0
  %1205 = vmatprep.subr.mxu0 0.0
  %1206 = vmatpush2.msra.mxu0 0.0
  %1207 = vmatprep.subr.mxu0 0.0
  %1208 = vmatpush2.msra.mxu0 0.0
  %1209 = vmatprep.subr.mxu0 0.0
  %1210 = vmatpush2.msra.mxu0 0.0
  %1211 = vmatprep.subr.mxu0 0.0
  %1212 = vmatpush2.msra.mxu0 0.0
  %1213 = vmatprep.subr.mxu0 0.0
  %1214 = vmatpush2.msra.mxu0 0.0
  %1215 = vmatprep.subr.mxu0 0.0
  %1216 = vmatpush2.msra.mxu0 0.0
  %1217 = vmatprep.subr.mxu0 0.0
  %1218 = vmatpush2.msra.mxu0 0.0
  %1219 = vmatprep.subr.mxu0 0.0
  %1220 = vmatpush2.msra.mxu0 0.0
  %1221 = vmatprep.subr.mxu0 0.0
  %1222 = vmatpush2.msra.mxu0 0.0
  %1223 = vmatprep.subr.mxu0 0.0
  %1224 = vmatpush2.msra.mxu0 0.0
  %1225 = vmatprep.mubr.f32.mxu0 0.0
  %1226 = vmatmul.mubr.f32.gmra.mxu0 %v1138
  %v1227 = vpop.f32.mrf.mxu0
  %v1228 = vadd.f32 %v1135, %v1227
  %v1229 = vpop.f32.mrf.mxu0
  %1230 = vmatprep.mubr.f32.mxu0 0.0
  %1231 = vmatmul.mubr.f32.gmra.mxu0 %v1141
  %v1232 = vpop.f32.mrf.mxu0
  %v1233 = vadd.f32 %v1135, %v1232
  %v1234 = vpop.f32.mrf.mxu0
  %1235 = vmatprep.mubr.f32.mxu0 0.0
  %1236 = vmatmul.mubr.f32.gmra.mxu0 %v1144
  %v1237 = vpop.f32.mrf.mxu0
  %v1238 = vadd.f32 %v1135, %v1237
  %v1239 = vpop.f32.mrf.mxu0
  %1240 = vmatprep.mubr.f32.mxu0 0.0
  %1241 = vmatmul.mubr.f32.gmra.mxu0 %v1147
  %v1242 = vpop.f32.mrf.mxu0
  %v1243 = vadd.f32 %v1135, %v1242
  %v1244 = vpop.f32.mrf.mxu0
  %1245 = vmatprep.mubr.f32.mxu0 0.0
  %1246 = vmatmul.mubr.f32.gmra.mxu0 %v1150
  %v1247 = vpop.f32.mrf.mxu0
  %v1248 = vadd.f32 %v1135, %v1247
  %v1249 = vpop.f32.mrf.mxu0
  %1250 = vmatprep.mubr.f32.mxu0 0.0
  %1251 = vmatmul.mubr.f32.gmra.mxu0 %v1153
  %v1252 = vpop.f32.mrf.mxu0
  %v1253 = vadd.f32 %v1135, %v1252
  %v1254 = vpop.f32.mrf.mxu0
  %1255 = vmatprep.mubr.f32.mxu0 0.0
  %1256 = vmatmul.mubr.f32.gmra.mxu0 %v1156
  %v1257 = vpop.f32.mrf.mxu0
  %v1258 = vadd.f32 %v1135, %v1257
  %v1259 = vpop.f32.mrf.mxu0
  %1260 = vmatprep.mubr.f32.mxu0 0.0
  %1261 = vmatmul.mubr.f32.gmra.mxu0 %v1159
  %v1262 = vpop.f32.mrf.mxu0
  %v1263 = vadd.f32 %v1135, %v1262
  %v1264 = vpop.f32.mrf.mxu0
  %1265 = vdwg.mxu0
  %1266 = vmax.xlane.f32.xlu0 %v1228
  %v1267 = vpop.xlane.xlu0 %1266
  %1268 = vmax.xlane.f32.xlu0 %v1233
  %v1269 = vpop.xlane.xlu0 %1268
  %1270 = vmax.xlane.f32.xlu0 %v1238
  %v1271 = vpop.xlane.xlu0 %1270
  %1272 = vmax.xlane.f32.xlu0 %v1243
  %v1273 = vpop.xlane.xlu0 %1272
  %1274 = vmax.xlane.f32.xlu0 %v1248
  %v1275 = vpop.xlane.xlu0 %1274
  %1276 = vmax.xlane.f32.xlu0 %v1253
  %v1277 = vpop.xlane.xlu0 %1276
  %1278 = vmax.xlane.f32.xlu0 %v1258
  %v1279 = vpop.xlane.xlu0 %1278
  %1280 = vmax.xlane.f32.xlu0 %v1263
  %v1281 = vpop.xlane.xlu0 %1280
  %v1282 = vsub.f32 %v1228, %v1267
  %v1283 = vsub.f32 %v1233, %v1269
  %v1284 = vsub.f32 %v1238, %v1271
  %v1285 = vsub.f32 %v1243, %v1273
  %v1286 = vsub.f32 %v1248, %v1275
  %v1287 = vsub.f32 %v1253, %v1277
  %v1288 = vsub.f32 %v1258, %v1279
  %v1289 = vsub.f32 %v1263, %v1281
  %v1290 = vmul.f32 %v1282, 1.442695
  %v1291 = vpow.pop %v1290
  %v1292 = vmul.f32 %v1283, 1.442695
  %v1293 = vpow.pop %v1292
  %v1294 = vmul.f32 %v1284, 1.442695
  %v1295 = vpow.pop %v1294
  %v1296 = vmul.f32 %v1285, 1.442695
  %v1297 = vpow.pop %v1296
  %v1298 = vmul.f32 %v1286, 1.442695
  %v1299 = vpow.pop %v1298
  %v1300 = vmul.f32 %v1287, 1.442695
  %v1301 = vpow.pop %v1300
  %v1302 = vmul.f32 %v1288, 1.442695
  %v1303 = vpow.pop %v1302
  %v1304 = vmul.f32 %v1289, 1.442695
  %v1305 = vpow.pop %v1304
  %1306 = vadd.xlane.f32.xlu0 %v1291
  %v1307 = vpop.xlane.xlu0 %1306
  %1308 = vadd.xlane.f32.xlu0 %v1293
  %v1309 = vpop.xlane.xlu0 %1308
  %1310 = vadd.xlane.f32.xlu0 %v1295
  %v1311 = vpop.xlane.xlu0 %1310
  %1312 = vadd.xlane.f32.xlu0 %v1297
  %v1313 = vpop.xlane.xlu0 %1312
  %1314 = vadd.xlane.f32.xlu0 %v1299
  %v1315 = vpop.xlane.xlu0 %1314
  %1316 = vadd.xlane.f32.xlu0 %v1301
  %v1317 = vpop.xlane.xlu0 %1316
  %1318 = vadd.xlane.f32.xlu0 %v1303
  %v1319 = vpop.xlane.xlu0 %1318
  %1320 = vadd.xlane.f32.xlu0 %v1305
  %v1321 = vpop.xlane.xlu0 %1320
  %v1322 = vlog2.pop %v1307
  %v1323 = vmul.f32 %v1322, 0.6931472
  %v1324 = vlog2.pop %v1309
  %v1325 = vmul.f32 %v1324, 0.6931472
  %v1326 = vlog2.pop %v1311
  %v1327 = vmul.f32 %v1326, 0.6931472
  %v1328 = vlog2.pop %v1313
  %v1329 = vmul.f32 %v1328, 0.6931472
  %v1330 = vlog2.pop %v1315
  %v1331 = vmul.f32 %v1330, 0.6931472
  %v1332 = vlog2.pop %v1317
  %v1333 = vmul.f32 %v1332, 0.6931472
  %v1334 = vlog2.pop %v1319
  %v1335 = vmul.f32 %v1334, 0.6931472
  %v1336 = vlog2.pop %v1321
  %v1337 = vmul.f32 %v1336, 0.6931472
  %v1338 = vadd.f32 %v1267, %v1323
  %v1339 = vadd.f32 %v1269, %v1325
  %v1340 = vadd.f32 %v1271, %v1327
  %v1341 = vadd.f32 %v1273, %v1329
  %v1342 = vadd.f32 %v1275, %v1331
  %v1343 = vadd.f32 %v1277, %v1333
  %v1344 = vadd.f32 %v1279, %v1335
  %v1345 = vadd.f32 %v1281, %v1337
  %v1346 = vlaneseq
  %v1347 = vand.u32 %v1346, 127
  %v1348 = vld [vmem:[%s8] sm:$0xff]
  %v1349 = vld [vmem:[%s8 + $0x8] sm:$0xff]
  %v1350 = vld [vmem:[%s8 + $0x10] sm:$0xff]
  %v1351 = vld [vmem:[%s8 + $0x18] sm:$0xff]
  %v1352 = vld [vmem:[%s8 + $0x20] sm:$0xff]
  %v1353 = vld [vmem:[%s8 + $0x28] sm:$0xff]
  %v1354 = vld [vmem:[%s8 + $0x30] sm:$0xff]
  %v1355 = vld [vmem:[%s8 + $0x38] sm:$0xff]
  %1356 = vset.pattern.permute.xlu0 0
  %1357 = vperm.xlu0 %1356, %v1348
  %v1358 = vpop.permute.xlu0 %1357
  %1359 = vset.pattern.permute.xlu0 0
  %1360 = vperm.xlu0 %1359, %v1349
  %v1361 = vpop.permute.xlu0 %1360
  %1362 = vset.pattern.permute.xlu0 0
  %1363 = vperm.xlu0 %1362, %v1350
  %v1364 = vpop.permute.xlu0 %1363
  %1365 = vset.pattern.permute.xlu0 0
  %1366 = vperm.xlu0 %1365, %v1351
  %v1367 = vpop.permute.xlu0 %1366
  %1368 = vset.pattern.permute.xlu0 0
  %1369 = vperm.xlu0 %1368, %v1352
  %v1370 = vpop.permute.xlu0 %1369
  %1371 = vset.pattern.permute.xlu0 0
  %1372 = vperm.xlu0 %1371, %v1353
  %v1373 = vpop.permute.xlu0 %1372
  %1374 = vset.pattern.permute.xlu0 0
  %1375 = vperm.xlu0 %1374, %v1354
  %v1376 = vpop.permute.xlu0 %1375
  %1377 = vset.pattern.permute.xlu0 0
  %1378 = vperm.xlu0 %1377, %v1355
  %v1379 = vpop.permute.xlu0 %1378
  %vm1380 = vcmp.eq.s32.totalorder %v1347, %v1358
  %vm1381 = vcmp.eq.s32.totalorder %v1347, %v1361
  %vm1382 = vcmp.eq.s32.totalorder %v1347, %v1364
  %vm1383 = vcmp.eq.s32.totalorder %v1347, %v1367
  %vm1384 = vcmp.eq.s32.totalorder %v1347, %v1370
  %vm1385 = vcmp.eq.s32.totalorder %v1347, %v1373
  %vm1386 = vcmp.eq.s32.totalorder %v1347, %v1376
  %vm1387 = vcmp.eq.s32.totalorder %v1347, %v1379
  %v1388 = vsel %vm1380, %v1228, 0.0
  %v1389 = vsel %vm1381, %v1233, 0.0
  %v1390 = vsel %vm1382, %v1238, 0.0
  %v1391 = vsel %vm1383, %v1243, 0.0
  %v1392 = vsel %vm1384, %v1248, 0.0
  %v1393 = vsel %vm1385, %v1253, 0.0
  %v1394 = vsel %vm1386, %v1258, 0.0
  %v1395 = vsel %vm1387, %v1263, 0.0
  %1396 = vadd.xlane.f32.xlu0 %v1388
  %v1397 = vpop.xlane.xlu0 %1396
  %1398 = vadd.xlane.f32.xlu0 %v1389
  %v1399 = vpop.xlane.xlu0 %1398
  %1400 = vadd.xlane.f32.xlu0 %v1390
  %v1401 = vpop.xlane.xlu0 %1400
  %1402 = vadd.xlane.f32.xlu0 %v1391
  %v1403 = vpop.xlane.xlu0 %1402
  %1404 = vadd.xlane.f32.xlu0 %v1392
  %v1405 = vpop.xlane.xlu0 %1404
  %1406 = vadd.xlane.f32.xlu0 %v1393
  %v1407 = vpop.xlane.xlu0 %1406
  %1408 = vadd.xlane.f32.xlu0 %v1394
  %v1409 = vpop.xlane.xlu0 %1408
  %1410 = vadd.xlane.f32.xlu0 %v1395
  %v1411 = vpop.xlane.xlu0 %1410
  %v1412 = vsub.f32 %v1338, %v1397
  %v1413 = vsub.f32 %v1339, %v1399
  %v1414 = vsub.f32 %v1340, %v1401
  %v1415 = vsub.f32 %v1341, %v1403
  %v1416 = vsub.f32 %v1342, %v1405
  %v1417 = vsub.f32 %v1343, %v1407
  %v1418 = vsub.f32 %v1344, %v1409
  %v1419 = vsub.f32 %v1345, %v1411
  %v1420 = vld [vmem:[%s9] sm:$0xff]
  %v1421 = vld [vmem:[%s9 + $0x8] sm:$0xff]
  %v1422 = vld [vmem:[%s9 + $0x10] sm:$0xff]
  %v1423 = vld [vmem:[%s9 + $0x18] sm:$0xff]
  %v1424 = vld [vmem:[%s9 + $0x20] sm:$0xff]
  %v1425 = vld [vmem:[%s9 + $0x28] sm:$0xff]
  %v1426 = vld [vmem:[%s9 + $0x30] sm:$0xff]
  %v1427 = vld [vmem:[%s9 + $0x38] sm:$0xff]
  %v1428 = vmul.f32 %v1412, %v1420
  %v1429 = vmul.f32 %v1413, %v1421
  %v1430 = vmul.f32 %v1414, %v1422
  %v1431 = vmul.f32 %v1415, %v1423
  %v1432 = vmul.f32 %v1416, %v1424
  %v1433 = vmul.f32 %v1417, %v1425
  %v1434 = vmul.f32 %v1418, %v1426
  %v1435 = vmul.f32 %v1419, %v1427
  %v1436 = vadd.f32 %v1428, %v1429
  %v1437 = vadd.f32 %v1436, %v1430
  %v1438 = vadd.f32 %v1437, %v1431
  %v1439 = vadd.f32 %v1438, %v1432
  %v1440 = vadd.f32 %v1439, %v1433
  %v1441 = vadd.f32 %v1440, %v1434
  %v1442 = vadd.f32 %v1441, %v1435
  %vm1443 = vcmask 7168
  %1444 = vst.msk [vmem:[%s10] sm:$0xff] %vm1443, %v1442
  // Predicated region
  $region42: #{tpu_custom_call.1} parent=0 // pred_check
    _
  $region43: #{tpu_custom_call.1} parent=0 // pred_check_branch
    %1446 = sbr.rel (0) target = $region45
  $region44: #{tpu_custom_call.1} parent=0 // pred_region
    _
  $region45: #{tpu_custom_call.1} parent=0 // pred_fallthru
    _
  // Predicated region
  $region46: #{tpu_custom_call.1} parent=0 // pred_check
    _
  $region47: #{tpu_custom_call.1} parent=0 // pred_check_branch
    %1448 = sbr.rel (0) target = $region49
  $region48: #{tpu_custom_call.1} parent=0 // pred_region
    _
  $region49: #{tpu_custom_call.1} parent=0 // pred_fallthru
    _

</llo_original>
